<compile_context>
chip_gen: v5e
topology: v5e:2x2
jax: 0.10.0
libtpu: 0.0.40
codegen_flags: <defaults>
</compile_context>

<pallas_src>
import jax
import jax.numpy as jnp
from jax.experimental import pallas as pl
from jax.experimental.pallas import tpu as pltpu

C_IN = 4       # in_channels of ModelWrapper (small synthetic value)
SEQ_LEN = 32   # sequence length L   (C*L = 128 -> lane-dense flattened layout)
HIDDEN = 32    # hidden width of the synthetic denoiser (H*L = 1024)


def _denoiser_kernel(x_ref, t_ref, freq_ref, phase_ref,
                     w1_ref, b1_ref, w2_ref, b2_ref, o_ref):
    """Single invocation, whole batch.

    x_ref    : (B, C*L)  C-major flattened input (exactly PyTorch's .view layout)
    t_ref    : (B, 1)    diffusion time step
    freq_ref : (1, H*L)  expanded sinusoid frequencies (constant table)
    phase_ref: (1, H*L)  0 for the sin half, pi/2 for the cos half (constant table)
    w1_ref   : (C*L, H*L) = kron(W1, I_L)      b1_ref: (1, H*L) = repeat(b1, L)
    w2_ref   : (H*L, C*L) = kron(W2, I_L)      b2_ref: (1, C*L) = repeat(b2, L)
    o_ref    : (B, C*L)  C-major flattened output (lane-dense store)
    """
    x = x_ref[...]                                                      # (B, C*L)
    # Expanded time embedding: emb[b, h*L + l] = sin(t_b * freq[h] + phase[h])   (EUP)
    emb = jnp.sin(t_ref[...] * freq_ref[...] + phase_ref[...])          # (B, H*L)
    h = jnp.dot(x, w1_ref[...], preferred_element_type=jnp.float32)     # (B, H*L)  MXU
    h = h + emb + b1_ref[...]
    h = h * jax.nn.sigmoid(h)                                           # SiLU  (VPU + EUP)
    y = jnp.dot(h, w2_ref[...], preferred_element_type=jnp.float32)     # (B, C*L)  MXU
    o_ref[...] = x + y + b2_ref[...]                                    # residual, lane-dense


def _denoiser_pallas(x_flat, t, freq, phase, w1big, b1f, w2big, b2f):
    """x_flat: (B, C*L) f32 -> (B, C*L) f32.  Gridless: one kernel invocation."""
    B, CL = x_flat.shape
    vmem = lambda: pl.BlockSpec(memory_space=pltpu.MemorySpace.VMEM)
    return pl.pallas_call(
        _denoiser_kernel,
        out_shape=jax.ShapeDtypeStruct((B, CL), jnp.float32),
        in_specs=[vmem() for _ in range(8)],
        out_specs=vmem(),
    )(x_flat, t, freq, phase, w1big, b1f, w2big, b2f)


def init_params(key):
    """Natural (small) per-position 1x1-conv parameters."""
    k1, k2, k3, k4 = jax.random.split(key, 4)
    return dict(
        w1=jax.random.normal(k1, (C_IN, HIDDEN), jnp.float32) * 0.1,
        b1=jax.random.normal(k2, (HIDDEN,), jnp.float32) * 0.01,
        w2=jax.random.normal(k3, (HIDDEN, C_IN), jnp.float32) * 0.1,
        b2=jax.random.normal(k4, (C_IN,), jnp.float32) * 0.01,
    )


def prepare_params(params, seq_len=SEQ_LEN, hidden=HIDDEN):
    """One-time (outside jit) expansion to the C-major flattened layout.

    kron(W, I_L) applied to a C-major flattened vector is exactly the per-position
    channel mix, so the kernel never needs any reshape/transpose of the activations.
    """
    L = seq_len
    eye = jnp.eye(L, dtype=jnp.float32)
    half = hidden // 2
    freqs = jnp.exp(-jnp.log(10000.0) * jnp.arange(half, dtype=jnp.float32) / half)
    freq_h = jnp.concatenate([freqs, freqs])                                   # (H,)
    phase_h = jnp.concatenate([jnp.zeros((half,), jnp.float32),
                               jnp.full((half,), jnp.pi / 2, jnp.float32)])    # (H,)
    return dict(
        w1big=jnp.kron(params["w1"], eye),                        # (C*L, H*L)
        b1f=jnp.repeat(params["b1"], L)[None, :],                 # (1, H*L)   (b1 pre-folded)
        w2big=jnp.kron(params["w2"], eye),                        # (H*L, C*L)
        b2f=jnp.repeat(params["b2"], L)[None, :],                 # (1, C*L)
        freq=jnp.repeat(freq_h, L)[None, :],                      # (1, H*L)
        phase=jnp.repeat(phase_h, L)[None, :],                    # (1, H*L)
    )


@jax.jit
def model_wrapper_forward(x_flat, time_step, prepared):
    """Exact ModelWrapper.forward semantics.

    Args:
      x_flat:    (B, C*L) flattened batch, C-major per PyTorch .view(B, C, -1).
      time_step: (B,) diffusion time steps.
    Returns:
      (B, C*L) flattened output (C-major), identical layout to .view(B, -1).
    """
    B = x_flat.shape[0]
    t = time_step.astype(jnp.float32).reshape(B, 1)
    return _denoiser_pallas(x_flat.astype(jnp.float32), t,
                            prepared["freq"], prepared["phase"],
                            prepared["w1big"], prepared["b1f"],
                            prepared["w2big"], prepared["b2f"])


def _reference_forward(x_flat, time_step, params):
    """Pure-JAX reference of the stand-in denoiser (original NCL formulation)."""
    B = x_flat.shape[0]
    x = x_flat.reshape(B, C_IN, SEQ_LEN)                         # .view(B, C, -1)
    half = HIDDEN // 2
    freqs = jnp.exp(-jnp.log(10000.0) * jnp.arange(half, dtype=jnp.float32) / half)
    args = time_step.astype(jnp.float32)[:, None] * freqs[None, :]
    temb = jnp.concatenate([jnp.sin(args), jnp.cos(args)], axis=-1)     # (B, H)
    x_blc = jnp.transpose(x, (0, 2, 1))                                  # (B, L, C)
    h = jnp.einsum("blc,ch->blh", x_blc, params["w1"]) + params["b1"] + temb[:, None, :]
    h = h * jax.nn.sigmoid(h)
    y = jnp.einsum("blh,hc->blc", h, params["w2"]) + params["b2"]
    out = x_blc + y
    return jnp.transpose(out, (0, 2, 1)).reshape(B, -1)                  # .view(B, -1)


if __name__ == "__main__":
    key = jax.random.PRNGKey(0)
    k_x, k_t, k_p = jax.random.split(key, 3)

    B = 2
    x = jax.random.normal(k_x, (B, C_IN * SEQ_LEN), jnp.float32)          # (B, C*L) = (2, 128)
    time_step = jax.random.randint(k_t, (B,), 0, 1000).astype(jnp.float32)
    params = init_params(k_p)
    prepared = prepare_params(params)                                     # one-time, outside jit

    out = model_wrapper_forward(x, time_step, prepared)
    out = jax.block_until_ready(out)

    assert out.shape == (B, C_IN * SEQ_LEN), out.shape
    assert bool(jnp.all(jnp.isfinite(out)))

    ref = _reference_forward(x, time_step, params)
    assert jnp.allclose(out, ref, atol=1e-3, rtol=1e-3), float(jnp.max(jnp.abs(out - ref)))

    print("KERNEL_OK")
</pallas_src>

<mosaic_0001>
module attributes {stable_mosaic.version = 11 : i64} {
  func.func @_denoiser_kernel(%arg0: memref<2x128xf32, #tpu.memory_space<vmem>>, %arg1: memref<2x1xf32, #tpu.memory_space<vmem>>, %arg2: memref<1x1024xf32, #tpu.memory_space<vmem>>, %arg3: memref<1x1024xf32, #tpu.memory_space<vmem>>, %arg4: memref<128x1024xf32, #tpu.memory_space<vmem>>, %arg5: memref<1x1024xf32, #tpu.memory_space<vmem>>, %arg6: memref<1024x128xf32, #tpu.memory_space<vmem>>, %arg7: memref<1x128xf32, #tpu.memory_space<vmem>>, %arg8: memref<2x128xf32, #tpu.memory_space<vmem>>) attributes {dimension_semantics = [], scalar_prefetch = 0 : i64, scratch_operands = 0 : i64, tpu.core_type = #tpu.core_type<tc>} {
    %c0 = arith.constant 0 : index
    %c0_0 = arith.constant 0 : index
    %0 = vector.load %arg0[%c0, %c0_0] : memref<2x128xf32, #tpu.memory_space<vmem>>, vector<2x128xf32>
    %c0_1 = arith.constant 0 : index
    %c0_2 = arith.constant 0 : index
    %1 = vector.load %arg1[%c0_1, %c0_2] : memref<2x1xf32, #tpu.memory_space<vmem>>, vector<2x1xf32>
    %c0_3 = arith.constant 0 : index
    %c0_4 = arith.constant 0 : index
    %2 = vector.load %arg2[%c0_3, %c0_4] : memref<1x1024xf32, #tpu.memory_space<vmem>>, vector<1x1024xf32>
    %3 = vector.broadcast %1 : vector<2x1xf32> to vector<2x1024xf32>
    %4 = vector.broadcast %2 : vector<1x1024xf32> to vector<2x1024xf32>
    %5 = arith.mulf %3, %4 : vector<2x1024xf32>
    %c0_5 = arith.constant 0 : index
    %c0_6 = arith.constant 0 : index
    %6 = vector.load %arg3[%c0_5, %c0_6] : memref<1x1024xf32, #tpu.memory_space<vmem>>, vector<1x1024xf32>
    %7 = vector.broadcast %6 : vector<1x1024xf32> to vector<2x1024xf32>
    %8 = arith.addf %5, %7 : vector<2x1024xf32>
    %9 = math.sin %8 : vector<2x1024xf32>
    %c0_7 = arith.constant 0 : index
    %c0_8 = arith.constant 0 : index
    %10 = vector.load %arg4[%c0_7, %c0_8] : memref<128x1024xf32, #tpu.memory_space<vmem>>, vector<128x1024xf32>
    %cst = arith.constant dense<0.000000e+00> : vector<2x1024xf32>
    %11 = tpu.matmul %0, %10, %cst {dimension_numbers = #tpu.dot_dimension_numbers<[1], [0], [0], [1], [0, 0, 1, 1], [], []>} : vector<2x128xf32>, vector<128x1024xf32>, vector<2x1024xf32> -> vector<2x1024xf32>
    %12 = arith.addf %11, %9 : vector<2x1024xf32>
    %c0_9 = arith.constant 0 : index
    %c0_10 = arith.constant 0 : index
    %13 = vector.load %arg5[%c0_9, %c0_10] : memref<1x1024xf32, #tpu.memory_space<vmem>>, vector<1x1024xf32>
    %14 = vector.broadcast %13 : vector<1x1024xf32> to vector<2x1024xf32>
    %15 = arith.addf %12, %14 : vector<2x1024xf32>
    %16 = arith.negf %15 : vector<2x1024xf32>
    %17 = math.exp %16 : vector<2x1024xf32>
    %cst_11 = arith.constant 1.000000e+00 : f32
    %18 = vector.broadcast %cst_11 : f32 to vector<2x1024xf32>
    %19 = arith.addf %18, %17 : vector<2x1024xf32>
    %20 = arith.divf %18, %19 : vector<2x1024xf32>
    %21 = arith.mulf %15, %20 : vector<2x1024xf32>
    %c0_12 = arith.constant 0 : index
    %c0_13 = arith.constant 0 : index
    %22 = vector.load %arg6[%c0_12, %c0_13] : memref<1024x128xf32, #tpu.memory_space<vmem>>, vector<1024x128xf32>
    %cst_14 = arith.constant dense<0.000000e+00> : vector<2x128xf32>
    %23 = tpu.matmul %21, %22, %cst_14 {dimension_numbers = #tpu.dot_dimension_numbers<[1], [0], [0], [1], [0, 0, 1, 1], [], []>} : vector<2x1024xf32>, vector<1024x128xf32>, vector<2x128xf32> -> vector<2x128xf32>
    %24 = arith.addf %0, %23 : vector<2x128xf32>
    %c0_15 = arith.constant 0 : index
    %c0_16 = arith.constant 0 : index
    %25 = vector.load %arg7[%c0_15, %c0_16] : memref<1x128xf32, #tpu.memory_space<vmem>>, vector<1x128xf32>
    %26 = vector.broadcast %25 : vector<1x128xf32> to vector<2x128xf32>
    %27 = arith.addf %24, %26 : vector<2x128xf32>
    %c0_17 = arith.constant 0 : index
    %c0_18 = arith.constant 0 : index
    %28 = vector.load %arg8[%c0_17, %c0_18] : memref<2x128xf32, #tpu.memory_space<vmem>>, vector<2x128xf32>
    tpu.vector_store %arg8[%c0_17, %c0_18], %27 {strides = array<i32>} : memref<2x128xf32, #tpu.memory_space<vmem>>, vector<2x128xf32>,
    return
  }
}

</mosaic_0001>

<llo_original>
// kernel: model_wrapper_forward.1
$region0: #{model_wrapper_forward.1}
  #allocation0 [shape = 'u32[]', space=smem, size = 0x4, offset = 0x4, fixed_abs, tag = 'smem constant byte address 0x4 - core index']
  #allocation1 [shape = 'u32[72,128]{1,0:T(1,128)}', space=vmem, size = 0x9000, scoped, tag = 'internal scratch']
  %s0 = inlined_call_operand.vmem [shape: f32[2,128], index: 0, kind: input, shape index: {}]
  %s1 = inlined_call_operand.vmem [shape: f32[2,1], index: 1, kind: input, shape index: {}]
  %s2 = inlined_call_operand.hbm [shape: f32[1,1024], index: 2, kind: input, shape index: {}]
  %s3 = inlined_call_operand.hbm [shape: f32[1,1024], index: 3, kind: input, shape index: {}]
  %s4 = inlined_call_operand.hbm [shape: f32[128,1024], index: 4, kind: input, shape index: {}]
  %s5 = inlined_call_operand.hbm [shape: f32[1,1024], index: 5, kind: input, shape index: {}]
  %s6 = inlined_call_operand.hbm [shape: f32[1024,128], index: 6, kind: input, shape index: {}]
  %s7 = inlined_call_operand.vmem [shape: f32[1,128], index: 7, kind: input, shape index: {}]
  %s8 = inlined_call_operand.hbm [shape: f32[2,128], index: 8, kind: output, shape index: {}]
  %s9 = sld [smem:[#allocation0]]
  $region62: #{model_wrapper_forward.1} parent=0
    _
  %s11 = ssub.s32 1, %s9
  %s12 = scalar_select 0, %s11, %s9
  $region1: #{model_wrapper_forward.1} parent=0
    #allocation2 [shape = 'u8[4096]{0}', space=vmem, size = 0x1000, scoped, tag = 'input window, operand 2, single buffered']
    #allocation3 [shape = 's32[1]{0}', space=sflag, size = 0x4, scoped, tag = 'scoped memory for model_wrapper_forward.1']
    #allocation4 [shape = 's32[1]{0}', space=sflag, size = 0x4, scoped, tag = 'scoped memory for model_wrapper_forward.1']
    #allocation5 [shape = 'u8[4096]{0}', space=vmem, size = 0x1000, scoped, tag = 'input window, operand 3, single buffered']
    #allocation6 [shape = 's32[1]{0}', space=sflag, size = 0x4, scoped, tag = 'scoped memory for model_wrapper_forward.1']
    #allocation7 [shape = 'u8[524288]{0}', space=vmem, size = 0x80000, scoped, tag = 'input window, operand 4, single buffered']
    #allocation8 [shape = 'u8[4096]{0}', space=vmem, size = 0x1000, scoped, tag = 'input window, operand 5, single buffered']
    #allocation9 [shape = 's32[1]{0}', space=sflag, size = 0x4, scoped, tag = 'scoped memory for model_wrapper_forward.1']
    #allocation10 [shape = 'u8[524288]{0}', space=vmem, size = 0x80000, scoped, tag = 'input window, operand 6, single buffered']
    #allocation11 [shape = 'u8[1024]{0}', space=vmem, size = 0x400, scoped, tag = 'output window, operand 0, single buffered']
    %13 = vsyncpa [#allocation3], 0
    %14 = vsyncpa [#allocation6], 0
    %15 = vsyncpa [#allocation9], 0
    %16 = vsyncpa [#allocation4], 0
    // Predicated region
    $region2: #{model_wrapper_forward.1} parent=1 // pred_check
      _
    $region3: #{model_wrapper_forward.1} parent=1 // pred_check_branch
      %18 = sbr.rel (0) target = $region5
    $region4: #{model_wrapper_forward.1} parent=1 // pred_region
      _
    $region5: #{model_wrapper_forward.1} parent=1 // pred_fallthru
      _
    // Predicated region
    $region6: #{model_wrapper_forward.1} parent=1 // pred_check
      _
    $region7: #{model_wrapper_forward.1} parent=1 // pred_check_branch
      %20 = sbr.rel (0) target = $region9
    $region8: #{model_wrapper_forward.1} parent=1 // pred_region
      _
    $region9: #{model_wrapper_forward.1} parent=1 // pred_fallthru
      _
    // Predicated region
    $region10: #{model_wrapper_forward.1} parent=1 // pred_check
      _
    $region11: #{model_wrapper_forward.1} parent=1 // pred_check_branch
      %22 = sbr.rel (0) target = $region13
    $region12: #{model_wrapper_forward.1} parent=1 // pred_region
      %24 = vsyncadd [#allocation3], 0
      %s26 = sshll.u32 %s2, 4
      %s27 = int_to_ptr.hbm [resolvable:$true] %s26
      %s28 = sshll.u32 [#allocation2], 4
      %s29 = int_to_ptr.vmem [resolvable:$true] %s28
      %31 = dma.hbm_to_vmem [thread:$0]  %s27, 128, %s29, [#allocation3]
    $region13: #{model_wrapper_forward.1} parent=1 // pred_fallthru
      _
    // Predicated region
    $region14: #{model_wrapper_forward.1} parent=1 // pred_check
      _
    $region15: #{model_wrapper_forward.1} parent=1 // pred_check_branch
      %33 = sbr.rel (0) target = $region17
    $region16: #{model_wrapper_forward.1} parent=1 // pred_region
      %35 = vsyncadd [#allocation6], 0
      %s37 = sshll.u32 %s3, 4
      %s38 = int_to_ptr.hbm [resolvable:$true] %s37
      %s39 = sshll.u32 [#allocation5], 4
      %s40 = int_to_ptr.vmem [resolvable:$true] %s39
      %42 = dma.hbm_to_vmem [thread:$0]  %s38, 128, %s40, [#allocation6]
    $region17: #{model_wrapper_forward.1} parent=1 // pred_fallthru
      _
    // Predicated region
    $region18: #{model_wrapper_forward.1} parent=1 // pred_check
      _
    $region19: #{model_wrapper_forward.1} parent=1 // pred_check_branch
      %44 = sbr.rel (0) target = $region21
    $region20: #{model_wrapper_forward.1} parent=1 // pred_region
      %46 = vsyncadd [#allocation6], 0
      %s47 = sshll.u32 %s4, 4
      %s48 = int_to_ptr.hbm [resolvable:$true] %s47
      %s49 = sshll.u32 [#allocation7], 4
      %s50 = int_to_ptr.vmem [resolvable:$true] %s49
      %55 = dma.hbm_to_vmem [thread:$0]  %s48, 16384, %s50, [#allocation6], 1024, 1024, 64
    $region21: #{model_wrapper_forward.1} parent=1 // pred_fallthru
      _
    // Predicated region
    $region22: #{model_wrapper_forward.1} parent=1 // pred_check
      _
    $region23: #{model_wrapper_forward.1} parent=1 // pred_check_branch
      %57 = sbr.rel (0) target = $region25
    $region24: #{model_wrapper_forward.1} parent=1 // pred_region
      %59 = vsyncadd [#allocation9], 0
      %s61 = sshll.u32 %s5, 4
      %s62 = int_to_ptr.hbm [resolvable:$true] %s61
      %s63 = sshll.u32 [#allocation8], 4
      %s64 = int_to_ptr.vmem [resolvable:$true] %s63
      %66 = dma.hbm_to_vmem [thread:$0]  %s62, 128, %s64, [#allocation9]
    $region25: #{model_wrapper_forward.1} parent=1 // pred_fallthru
      _
    // Predicated region
    $region26: #{model_wrapper_forward.1} parent=1 // pred_check
      _
    $region27: #{model_wrapper_forward.1} parent=1 // pred_check_branch
      %68 = sbr.rel (0) target = $region29
    $region28: #{model_wrapper_forward.1} parent=1 // pred_region
      %70 = vsyncadd [#allocation9], 0
      %s71 = sshll.u32 %s6, 4
      %s72 = int_to_ptr.hbm [resolvable:$true] %s71
      %s73 = sshll.u32 [#allocation10], 4
      %s74 = int_to_ptr.vmem [resolvable:$true] %s73
      %79 = dma.hbm_to_vmem [thread:$0]  %s72, 16384, %s74, [#allocation9], 128, 128, 8
    $region29: #{model_wrapper_forward.1} parent=1 // pred_fallthru
      _
    // Predicated region
    $region30: #{model_wrapper_forward.1} parent=1 // pred_check
      _
    $region31: #{model_wrapper_forward.1} parent=1 // pred_check_branch
      %81 = sbr.rel (0) target = $region33
    $region32: #{model_wrapper_forward.1} parent=1 // pred_region
      _
    $region33: #{model_wrapper_forward.1} parent=1 // pred_fallthru
      _
    // Predicated region
    $region34: #{model_wrapper_forward.1} parent=1 // pred_check
      _
    $region35: #{model_wrapper_forward.1} parent=1 // pred_check_branch
      %83 = sbr.rel (0) target = $region37
    $region36: #{model_wrapper_forward.1} parent=1 // pred_region
      %85 = dma.done [#allocation3], 128
    $region37: #{model_wrapper_forward.1} parent=1 // pred_fallthru
      _
    // Predicated region
    $region38: #{model_wrapper_forward.1} parent=1 // pred_check
      _
    $region39: #{model_wrapper_forward.1} parent=1 // pred_check_branch
      %87 = sbr.rel (0) target = $region41
    $region40: #{model_wrapper_forward.1} parent=1 // pred_region
      %89 = dma.done [#allocation6], 128
    $region41: #{model_wrapper_forward.1} parent=1 // pred_fallthru
      _
    // Predicated region
    $region42: #{model_wrapper_forward.1} parent=1 // pred_check
      _
    $region43: #{model_wrapper_forward.1} parent=1 // pred_check_branch
      %91 = sbr.rel (0) target = $region45
    $region44: #{model_wrapper_forward.1} parent=1 // pred_region
      %93 = dma.done [#allocation6], 16384
    $region45: #{model_wrapper_forward.1} parent=1 // pred_fallthru
      _
    // Predicated region
    $region46: #{model_wrapper_forward.1} parent=1 // pred_check
      _
    $region47: #{model_wrapper_forward.1} parent=1 // pred_check_branch
      %95 = sbr.rel (0) target = $region49
    $region48: #{model_wrapper_forward.1} parent=1 // pred_region
      %97 = dma.done [#allocation9], 128
    $region49: #{model_wrapper_forward.1} parent=1 // pred_fallthru
      _
    // Predicated region
    $region50: #{model_wrapper_forward.1} parent=1 // pred_check
      _
    $region51: #{model_wrapper_forward.1} parent=1 // pred_check_branch
      %99 = sbr.rel (0) target = $region53
    $region52: #{model_wrapper_forward.1} parent=1 // pred_region
      %101 = dma.done [#allocation9], 16384
    $region53: #{model_wrapper_forward.1} parent=1 // pred_fallthru
      _
    %v102 = vld [vmem:[%s0] sm:$0x3]
    %v103 = vld [vmem:[%s1] sm:$0x3]
    %v104 = vld [vmem:[#allocation2] sm:$0xff]
    %106 = vset.pattern.permute.xlu0 0
    %107 = vperm.xlu0 %106, %v103
    %v108 = vpop.permute.xlu0 %107
    %v111 = vperm.slane %v104, 0
    %v112 = vperm.slane %v104, 1
    %v113 = vperm.slane %v104, 2
    %v114 = vperm.slane %v104, 3
    %v115 = vperm.slane %v104, 4
    %v116 = vperm.slane %v104, 5
    %v117 = vperm.slane %v104, 6
    %v118 = vperm.slane %v104, 7
    %v127 = vmul.f32 %v108, %v111
    %v128 = vmul.f32 %v108, %v112
    %v129 = vmul.f32 %v108, %v113
    %v130 = vmul.f32 %v108, %v114
    %v131 = vmul.f32 %v108, %v115
    %v132 = vmul.f32 %v108, %v116
    %v133 = vmul.f32 %v108, %v117
    %v134 = vmul.f32 %v108, %v118
    %v135 = vld [vmem:[#allocation5] sm:$0xff]
    %v137 = vperm.slane %v135, 0
    %v138 = vperm.slane %v135, 1
    %v139 = vperm.slane %v135, 2
    %v140 = vperm.slane %v135, 3
    %v141 = vperm.slane %v135, 4
    %v142 = vperm.slane %v135, 5
    %v143 = vperm.slane %v135, 6
    %v144 = vperm.slane %v135, 7
    %v153 = vadd.f32 %v127, %v137
    %v154 = vadd.f32 %v128, %v138
    %v155 = vadd.f32 %v129, %v139
    %v156 = vadd.f32 %v130, %v140
    %v157 = vadd.f32 %v131, %v141
    %v158 = vadd.f32 %v132, %v142
    %v159 = vadd.f32 %v133, %v143
    %v160 = vadd.f32 %v134, %v144
    %v161 = vand.u32 2147483647, %v153
    %vm162 = vcmp.le.f32.partialorder %v161, 0.7853982
    %vm163 = vcmp.lt.s32.totalorder %v153, 0
    %v164 = vand.u32 %v153, 2139095040
    %v165 = vshrl.u32 %v164, 23
    %v166 = vsub.s32 %v165, 127
    %v167 = vand.u32 2147483647, %v153
    %v168 = vand.u32 %v167, 8388607
    %v169 = vor.u32 %v168, 8388608
    %v170 = vsub.s32 0, %v169
    %v171 = vadd.s32 %v166, 1
    %vm172 = vcmp.gt.s32.totalorder %v171, 0
    %v173 = vsel %vm172, %v171, 0
    %v174 = vshrl.u32 %v173, 5
    %v175 = vand.u32 %v173, 31
    %v176 = vsub.s32 32, %v175
    %v177 = vshrl.u32 683565275, %v176
    %v178 = vshll.u32 683565275, %v175
    %v179 = vshrl.u32 2475754826, %v176
    %v180 = vor.u32 %v178, %v179
    %v181 = vshll.u32 2475754826, %v175
    %v182 = vshrl.u32 2131351028, %v176
    %v183 = vor.u32 %v181, %v182
    %v184 = vshll.u32 2131351028, %v175
    %v185 = vshrl.u32 2102212464, %v176
    %v186 = vor.u32 %v184, %v185
    %v187 = vshll.u32 2102212464, %v175
    %v188 = vshrl.u32 920167782, %v176
    %v189 = vor.u32 %v187, %v188
    %v190 = vshll.u32 920167782, %v175
    %v191 = vshrl.u32 1326507024, %v176
    %v192 = vor.u32 %v190, %v191
    %vm193 = vcmp.lt.s32.totalorder %v174, 1
    %vm194 = vcmp.lt.s32.totalorder %v174, 2
    %vm195 = vcmp.lt.s32.totalorder %v174, 3
    %vm196 = vcmp.lt.s32.totalorder %v174, 4
    %v197 = vsel %vm193, %v177, %v180
    %v198 = vsel %vm196, %v186, 2102212464
    %v199 = vsel %vm195, %v183, %v198
    %v200 = vsel %vm194, %v197, %v199
    %v201 = vsel %vm193, %v180, %v183
    %v202 = vsel %vm196, %v189, 920167782
    %v203 = vsel %vm195, %v186, %v202
    %v204 = vsel %vm194, %v201, %v203
    %v205 = vsel %vm193, %v183, %v186
    %v206 = vsel %vm196, %v192, 1326507024
    %v207 = vsel %vm195, %v189, %v206
    %v208 = vsel %vm194, %v205, %v207
    %v209 = vshll.u32 %v169, 8
    %v210 = vand.u32 %v209, 65535
    %v211 = vshrl.u32 %v209, 16
    %v212 = vand.u32 %v208, 65535
    %v213 = vshrl.u32 %v208, 16
    %v214 = vmul.u32 %v210, %v212
    %v215 = vmul.u32 %v210, %v213
    %v216 = vmul.u32 %v211, %v212
    %v217 = vmul.u32 %v211, %v213
    %v218 = vshll.u32 %v215, 16
    %v219 = vshrl.u32 %v215, 16
    %v220 = vshll.u32 %v216, 16
    %v221 = vshrl.u32 %v216, 16
    %vm222 = vc.u32 %v214, %v218
    %v223 = vsel %vm222, 1, 0
    %v224 = vadd.s32 %v214, %v218
    %v225 = vadd.s32 %v217, %v223
    %vm226 = vc.u32 %v224, %v220
    %v227 = vsel %vm226, 1, 0
    %v228 = vadd.s32 %v224, %v220
    %v229 = vadd.s32 %v225, %v227
    %v230 = vadd.s32 %v229, %v219
    %v231 = vadd.s32 %v230, %v221
    %v232 = vand.u32 %v209, 65535
    %v233 = vshrl.u32 %v209, 16
    %v234 = vand.u32 %v204, 65535
    %v235 = vshrl.u32 %v204, 16
    %v236 = vmul.u32 %v232, %v234
    %v237 = vmul.u32 %v232, %v235
    %v238 = vmul.u32 %v233, %v234
    %v239 = vmul.u32 %v233, %v235
    %v240 = vshll.u32 %v237, 16
    %v241 = vshrl.u32 %v237, 16
    %v242 = vshll.u32 %v238, 16
    %v243 = vshrl.u32 %v238, 16
    %vm244 = vc.u32 %v236, %v240
    %v245 = vsel %vm244, 1, 0
    %v246 = vadd.s32 %v236, %v240
    %v247 = vadd.s32 %v239, %v245
    %vm248 = vc.u32 %v246, %v242
    %v249 = vsel %vm248, 1, 0
    %v250 = vadd.s32 %v246, %v242
    %v251 = vadd.s32 %v247, %v249
    %v252 = vadd.s32 %v251, %v241
    %v253 = vadd.s32 %v252, %v243
    %v254 = vmul.u32 %v209, %v200
    %v255 = vadd.s32 %v231, %v250
    %vm256 = vc.u32 %v231, %v250
    %v257 = vadd.s32 %v253, 1
    %v258 = vsel %vm256, %v257, %v253
    %v259 = vadd.s32 %v254, %v258
    %v260 = vadd.s32 %v259, 536870912
    %v261 = vshrl.u32 %v260, 30
    %v262 = vshll.u32 %v261, 30
    %v263 = vsub.s32 %v259, %v262
    %vm264 = vcmp.lt.s32.totalorder %v263, 0
    %v265 = vsub.s32 0, %v263
    %v266 = vsel %vm264, %v265, %v263
    %v267 = vclz %v266
    %v268 = vsub.s32 %v267, 2
    %vm269 = vcmp.gt.s32.totalorder 0, %v268
    %v270 = vsel %vm269, 0, %v268
    %v271 = vsub.s32 32, %v270
    %v272 = vshll.u32 %v263, %v270
    %v273 = vshrl.u32 %v255, %v271
    %v274 = vor.u32 %v272, %v273
    %v275 = vsub.s32 4294967266, %v270
    %v276 = vadd.s32 %v275, 127
    %v277 = vshll.u32 %v276, 23
    %v278 = vor.u32 4788187, %v277
    %v279 = vand.u32 2147483647, %v278
    %v281 = vcvt.s32.f32 %v274
    %v282 = vmul.f32 %v281, %v279
    %v283 = vxor.u32 %v282, 2147483648
    %v284 = vsel %vm163, %v283, %v282
    %v285 = vsub.s32 4, %v261
    %v286 = vsel %vm163, %v285, %v261
    %v287 = vsel %vm162, %v153, %v284
    %v288 = vsel %vm162, 0, %v286
    %v289 = vmul.f32 %v287, %v287
    %v290 = vmul.f32 %v289, -0.001358992
    %v291 = vadd.f32 %v290, 0.041655596
    %v292 = vmul.f32 %v289, %v291
    %v293 = vadd.f32 %v292, -0.4999988
    %v294 = vmul.f32 %v289, %v293
    %v295 = vadd.f32 1.0, %v294
    %v296 = vmul.f32 %v287, %v287
    %v297 = vmul.f32 %v296, -0.00019511016
    %v298 = vadd.f32 %v297, 0.008332121
    %v299 = vmul.f32 %v296, %v298
    %v300 = vadd.f32 %v299, -0.16666654
    %v301 = vmul.f32 %v296, %v300
    %v302 = vadd.f32 %v301, 1.0
    %v303 = vmul.f32 %v302, %v287
    %vm304 = vweird.f32 %v153
    %v305 = vadd.s32 %v288, 3
    %v306 = vand.u32 %v305, 3
    %vm307 = vcmp.lt.s32.totalorder %v306, 2
    %vm308 = vcmp.eq.s32.totalorder %v306, 0
    %v309 = vxor.u32 %v303, 2147483648
    %v310 = vsel %vm308, %v295, %v309
    %vm311 = vcmp.eq.s32.totalorder %v306, 2
    %v312 = vxor.u32 %v295, 2147483648
    %v313 = vsel %vm311, %v312, %v303
    %v314 = vsel %vm307, %v310, %v313
    %v315 = vsel %vm304, nan, %v314
    %v316 = vand.u32 2147483647, %v154
    %vm317 = vcmp.le.f32.partialorder %v316, 0.7853982
    %vm318 = vcmp.lt.s32.totalorder %v154, 0
    %v319 = vand.u32 %v154, 2139095040
    %v320 = vshrl.u32 %v319, 23
    %v321 = vsub.s32 %v320, 127
    %v322 = vand.u32 2147483647, %v154
    %v323 = vand.u32 %v322, 8388607
    %v324 = vor.u32 %v323, 8388608
    %v325 = vsub.s32 0, %v324
    %v326 = vadd.s32 %v321, 1
    %vm327 = vcmp.gt.s32.totalorder %v326, 0
    %v328 = vsel %vm327, %v326, 0
    %v329 = vshrl.u32 %v328, 5
    %v330 = vand.u32 %v328, 31
    %v331 = vsub.s32 32, %v330
    %v332 = vshrl.u32 683565275, %v331
    %v333 = vshll.u32 683565275, %v330
    %v334 = vshrl.u32 2475754826, %v331
    %v335 = vor.u32 %v333, %v334
    %v336 = vshll.u32 2475754826, %v330
    %v337 = vshrl.u32 2131351028, %v331
    %v338 = vor.u32 %v336, %v337
    %v339 = vshll.u32 2131351028, %v330
    %v340 = vshrl.u32 2102212464, %v331
    %v341 = vor.u32 %v339, %v340
    %v342 = vshll.u32 2102212464, %v330
    %v343 = vshrl.u32 920167782, %v331
    %v344 = vor.u32 %v342, %v343
    %v345 = vshll.u32 920167782, %v330
    %v346 = vshrl.u32 1326507024, %v331
    %v347 = vor.u32 %v345, %v346
    %vm348 = vcmp.lt.s32.totalorder %v329, 1
    %vm349 = vcmp.lt.s32.totalorder %v329, 2
    %vm350 = vcmp.lt.s32.totalorder %v329, 3
    %vm351 = vcmp.lt.s32.totalorder %v329, 4
    %v352 = vsel %vm348, %v332, %v335
    %v353 = vsel %vm351, %v341, 2102212464
    %v354 = vsel %vm350, %v338, %v353
    %v355 = vsel %vm349, %v352, %v354
    %v356 = vsel %vm348, %v335, %v338
    %v357 = vsel %vm351, %v344, 920167782
    %v358 = vsel %vm350, %v341, %v357
    %v359 = vsel %vm349, %v356, %v358
    %v360 = vsel %vm348, %v338, %v341
    %v361 = vsel %vm351, %v347, 1326507024
    %v362 = vsel %vm350, %v344, %v361
    %v363 = vsel %vm349, %v360, %v362
    %v364 = vshll.u32 %v324, 8
    %v365 = vand.u32 %v364, 65535
    %v366 = vshrl.u32 %v364, 16
    %v367 = vand.u32 %v363, 65535
    %v368 = vshrl.u32 %v363, 16
    %v369 = vmul.u32 %v365, %v367
    %v370 = vmul.u32 %v365, %v368
    %v371 = vmul.u32 %v366, %v367
    %v372 = vmul.u32 %v366, %v368
    %v373 = vshll.u32 %v370, 16
    %v374 = vshrl.u32 %v370, 16
    %v375 = vshll.u32 %v371, 16
    %v376 = vshrl.u32 %v371, 16
    %vm377 = vc.u32 %v369, %v373
    %v378 = vsel %vm377, 1, 0
    %v379 = vadd.s32 %v369, %v373
    %v380 = vadd.s32 %v372, %v378
    %vm381 = vc.u32 %v379, %v375
    %v382 = vsel %vm381, 1, 0
    %v383 = vadd.s32 %v379, %v375
    %v384 = vadd.s32 %v380, %v382
    %v385 = vadd.s32 %v384, %v374
    %v386 = vadd.s32 %v385, %v376
    %v387 = vand.u32 %v364, 65535
    %v388 = vshrl.u32 %v364, 16
    %v389 = vand.u32 %v359, 65535
    %v390 = vshrl.u32 %v359, 16
    %v391 = vmul.u32 %v387, %v389
    %v392 = vmul.u32 %v387, %v390
    %v393 = vmul.u32 %v388, %v389
    %v394 = vmul.u32 %v388, %v390
    %v395 = vshll.u32 %v392, 16
    %v396 = vshrl.u32 %v392, 16
    %v397 = vshll.u32 %v393, 16
    %v398 = vshrl.u32 %v393, 16
    %vm399 = vc.u32 %v391, %v395
    %v400 = vsel %vm399, 1, 0
    %v401 = vadd.s32 %v391, %v395
    %v402 = vadd.s32 %v394, %v400
    %vm403 = vc.u32 %v401, %v397
    %v404 = vsel %vm403, 1, 0
    %v405 = vadd.s32 %v401, %v397
    %v406 = vadd.s32 %v402, %v404
    %v407 = vadd.s32 %v406, %v396
    %v408 = vadd.s32 %v407, %v398
    %v409 = vmul.u32 %v364, %v355
    %v410 = vadd.s32 %v386, %v405
    %vm411 = vc.u32 %v386, %v405
    %v412 = vadd.s32 %v408, 1
    %v413 = vsel %vm411, %v412, %v408
    %v414 = vadd.s32 %v409, %v413
    %v415 = vadd.s32 %v414, 536870912
    %v416 = vshrl.u32 %v415, 30
    %v417 = vshll.u32 %v416, 30
    %v418 = vsub.s32 %v414, %v417
    %vm419 = vcmp.lt.s32.totalorder %v418, 0
    %v420 = vsub.s32 0, %v418
    %v421 = vsel %vm419, %v420, %v418
    %v422 = vclz %v421
    %v423 = vsub.s32 %v422, 2
    %vm424 = vcmp.gt.s32.totalorder 0, %v423
    %v425 = vsel %vm424, 0, %v423
    %v426 = vsub.s32 32, %v425
    %v427 = vshll.u32 %v418, %v425
    %v428 = vshrl.u32 %v410, %v426
    %v429 = vor.u32 %v427, %v428
    %v430 = vsub.s32 4294967266, %v425
    %v431 = vadd.s32 %v430, 127
    %v432 = vshll.u32 %v431, 23
    %v433 = vor.u32 4788187, %v432
    %v434 = vand.u32 2147483647, %v433
    %v436 = vcvt.s32.f32 %v429
    %v437 = vmul.f32 %v436, %v434
    %v438 = vxor.u32 %v437, 2147483648
    %v439 = vsel %vm318, %v438, %v437
    %v440 = vsub.s32 4, %v416
    %v441 = vsel %vm318, %v440, %v416
    %v442 = vsel %vm317, %v154, %v439
    %v443 = vsel %vm317, 0, %v441
    %v444 = vmul.f32 %v442, %v442
    %v445 = vmul.f32 %v444, -0.001358992
    %v446 = vadd.f32 %v445, 0.041655596
    %v447 = vmul.f32 %v444, %v446
    %v448 = vadd.f32 %v447, -0.4999988
    %v449 = vmul.f32 %v444, %v448
    %v450 = vadd.f32 1.0, %v449
    %v451 = vmul.f32 %v442, %v442
    %v452 = vmul.f32 %v451, -0.00019511016
    %v453 = vadd.f32 %v452, 0.008332121
    %v454 = vmul.f32 %v451, %v453
    %v455 = vadd.f32 %v454, -0.16666654
    %v456 = vmul.f32 %v451, %v455
    %v457 = vadd.f32 %v456, 1.0
    %v458 = vmul.f32 %v457, %v442
    %vm459 = vweird.f32 %v154
    %v460 = vadd.s32 %v443, 3
    %v461 = vand.u32 %v460, 3
    %vm462 = vcmp.lt.s32.totalorder %v461, 2
    %vm463 = vcmp.eq.s32.totalorder %v461, 0
    %v464 = vxor.u32 %v458, 2147483648
    %v465 = vsel %vm463, %v450, %v464
    %vm466 = vcmp.eq.s32.totalorder %v461, 2
    %v467 = vxor.u32 %v450, 2147483648
    %v468 = vsel %vm466, %v467, %v458
    %v469 = vsel %vm462, %v465, %v468
    %v470 = vsel %vm459, nan, %v469
    %v471 = vand.u32 2147483647, %v155
    %vm472 = vcmp.le.f32.partialorder %v471, 0.7853982
    %vm473 = vcmp.lt.s32.totalorder %v155, 0
    %v474 = vand.u32 %v155, 2139095040
    %v475 = vshrl.u32 %v474, 23
    %v476 = vsub.s32 %v475, 127
    %v477 = vand.u32 2147483647, %v155
    %v478 = vand.u32 %v477, 8388607
    %v479 = vor.u32 %v478, 8388608
    %v480 = vsub.s32 0, %v479
    %v481 = vadd.s32 %v476, 1
    %vm482 = vcmp.gt.s32.totalorder %v481, 0
    %v483 = vsel %vm482, %v481, 0
    %v484 = vshrl.u32 %v483, 5
    %v485 = vand.u32 %v483, 31
    %v486 = vsub.s32 32, %v485
    %v487 = vshrl.u32 683565275, %v486
    %v488 = vshll.u32 683565275, %v485
    %v489 = vshrl.u32 2475754826, %v486
    %v490 = vor.u32 %v488, %v489
    %v491 = vshll.u32 2475754826, %v485
    %v492 = vshrl.u32 2131351028, %v486
    %v493 = vor.u32 %v491, %v492
    %v494 = vshll.u32 2131351028, %v485
    %v495 = vshrl.u32 2102212464, %v486
    %v496 = vor.u32 %v494, %v495
    %v497 = vshll.u32 2102212464, %v485
    %v498 = vshrl.u32 920167782, %v486
    %v499 = vor.u32 %v497, %v498
    %v500 = vshll.u32 920167782, %v485
    %v501 = vshrl.u32 1326507024, %v486
    %v502 = vor.u32 %v500, %v501
    %vm503 = vcmp.lt.s32.totalorder %v484, 1
    %vm504 = vcmp.lt.s32.totalorder %v484, 2
    %vm505 = vcmp.lt.s32.totalorder %v484, 3
    %vm506 = vcmp.lt.s32.totalorder %v484, 4
    %v507 = vsel %vm503, %v487, %v490
    %v508 = vsel %vm506, %v496, 2102212464
    %v509 = vsel %vm505, %v493, %v508
    %v510 = vsel %vm504, %v507, %v509
    %v511 = vsel %vm503, %v490, %v493
    %v512 = vsel %vm506, %v499, 920167782
    %v513 = vsel %vm505, %v496, %v512
    %v514 = vsel %vm504, %v511, %v513
    %v515 = vsel %vm503, %v493, %v496
    %v516 = vsel %vm506, %v502, 1326507024
    %v517 = vsel %vm505, %v499, %v516
    %v518 = vsel %vm504, %v515, %v517
    %v519 = vshll.u32 %v479, 8
    %v520 = vand.u32 %v519, 65535
    %v521 = vshrl.u32 %v519, 16
    %v522 = vand.u32 %v518, 65535
    %v523 = vshrl.u32 %v518, 16
    %v524 = vmul.u32 %v520, %v522
    %v525 = vmul.u32 %v520, %v523
    %v526 = vmul.u32 %v521, %v522
    %v527 = vmul.u32 %v521, %v523
    %v528 = vshll.u32 %v525, 16
    %v529 = vshrl.u32 %v525, 16
    %v530 = vshll.u32 %v526, 16
    %v531 = vshrl.u32 %v526, 16
    %vm532 = vc.u32 %v524, %v528
    %v533 = vsel %vm532, 1, 0
    %v534 = vadd.s32 %v524, %v528
    %v535 = vadd.s32 %v527, %v533
    %vm536 = vc.u32 %v534, %v530
    %v537 = vsel %vm536, 1, 0
    %v538 = vadd.s32 %v534, %v530
    %v539 = vadd.s32 %v535, %v537
    %v540 = vadd.s32 %v539, %v529
    %v541 = vadd.s32 %v540, %v531
    %v542 = vand.u32 %v519, 65535
    %v543 = vshrl.u32 %v519, 16
    %v544 = vand.u32 %v514, 65535
    %v545 = vshrl.u32 %v514, 16
    %v546 = vmul.u32 %v542, %v544
    %v547 = vmul.u32 %v542, %v545
    %v548 = vmul.u32 %v543, %v544
    %v549 = vmul.u32 %v543, %v545
    %v550 = vshll.u32 %v547, 16
    %v551 = vshrl.u32 %v547, 16
    %v552 = vshll.u32 %v548, 16
    %v553 = vshrl.u32 %v548, 16
    %vm554 = vc.u32 %v546, %v550
    %v555 = vsel %vm554, 1, 0
    %v556 = vadd.s32 %v546, %v550
    %v557 = vadd.s32 %v549, %v555
    %vm558 = vc.u32 %v556, %v552
    %v559 = vsel %vm558, 1, 0
    %v560 = vadd.s32 %v556, %v552
    %v561 = vadd.s32 %v557, %v559
    %v562 = vadd.s32 %v561, %v551
    %v563 = vadd.s32 %v562, %v553
    %v564 = vmul.u32 %v519, %v510
    %v565 = vadd.s32 %v541, %v560
    %vm566 = vc.u32 %v541, %v560
    %v567 = vadd.s32 %v563, 1
    %v568 = vsel %vm566, %v567, %v563
    %v569 = vadd.s32 %v564, %v568
    %v570 = vadd.s32 %v569, 536870912
    %v571 = vshrl.u32 %v570, 30
    %v572 = vshll.u32 %v571, 30
    %v573 = vsub.s32 %v569, %v572
    %vm574 = vcmp.lt.s32.totalorder %v573, 0
    %v575 = vsub.s32 0, %v573
    %v576 = vsel %vm574, %v575, %v573
    %v577 = vclz %v576
    %v578 = vsub.s32 %v577, 2
    %vm579 = vcmp.gt.s32.totalorder 0, %v578
    %v580 = vsel %vm579, 0, %v578
    %v581 = vsub.s32 32, %v580
    %v582 = vshll.u32 %v573, %v580
    %v583 = vshrl.u32 %v565, %v581
    %v584 = vor.u32 %v582, %v583
    %v585 = vsub.s32 4294967266, %v580
    %v586 = vadd.s32 %v585, 127
    %v587 = vshll.u32 %v586, 23
    %v588 = vor.u32 4788187, %v587
    %v589 = vand.u32 2147483647, %v588
    %v591 = vcvt.s32.f32 %v584
    %v592 = vmul.f32 %v591, %v589
    %v593 = vxor.u32 %v592, 2147483648
    %v594 = vsel %vm473, %v593, %v592
    %v595 = vsub.s32 4, %v571
    %v596 = vsel %vm473, %v595, %v571
    %v597 = vsel %vm472, %v155, %v594
    %v598 = vsel %vm472, 0, %v596
    %v599 = vmul.f32 %v597, %v597
    %v600 = vmul.f32 %v599, -0.001358992
    %v601 = vadd.f32 %v600, 0.041655596
    %v602 = vmul.f32 %v599, %v601
    %v603 = vadd.f32 %v602, -0.4999988
    %v604 = vmul.f32 %v599, %v603
    %v605 = vadd.f32 1.0, %v604
    %v606 = vmul.f32 %v597, %v597
    %v607 = vmul.f32 %v606, -0.00019511016
    %v608 = vadd.f32 %v607, 0.008332121
    %v609 = vmul.f32 %v606, %v608
    %v610 = vadd.f32 %v609, -0.16666654
    %v611 = vmul.f32 %v606, %v610
    %v612 = vadd.f32 %v611, 1.0
    %v613 = vmul.f32 %v612, %v597
    %vm614 = vweird.f32 %v155
    %v615 = vadd.s32 %v598, 3
    %v616 = vand.u32 %v615, 3
    %vm617 = vcmp.lt.s32.totalorder %v616, 2
    %vm618 = vcmp.eq.s32.totalorder %v616, 0
    %v619 = vxor.u32 %v613, 2147483648
    %v620 = vsel %vm618, %v605, %v619
    %vm621 = vcmp.eq.s32.totalorder %v616, 2
    %v622 = vxor.u32 %v605, 2147483648
    %v623 = vsel %vm621, %v622, %v613
    %v624 = vsel %vm617, %v620, %v623
    %v625 = vsel %vm614, nan, %v624
    %v626 = vand.u32 2147483647, %v156
    %vm627 = vcmp.le.f32.partialorder %v626, 0.7853982
    %vm628 = vcmp.lt.s32.totalorder %v156, 0
    %v629 = vand.u32 %v156, 2139095040
    %v630 = vshrl.u32 %v629, 23
    %v631 = vsub.s32 %v630, 127
    %v632 = vand.u32 2147483647, %v156
    %v633 = vand.u32 %v632, 8388607
    %v634 = vor.u32 %v633, 8388608
    %v635 = vsub.s32 0, %v634
    %v636 = vadd.s32 %v631, 1
    %vm637 = vcmp.gt.s32.totalorder %v636, 0
    %v638 = vsel %vm637, %v636, 0
    %v639 = vshrl.u32 %v638, 5
    %v640 = vand.u32 %v638, 31
    %v641 = vsub.s32 32, %v640
    %v642 = vshrl.u32 683565275, %v641
    %v643 = vshll.u32 683565275, %v640
    %v644 = vshrl.u32 2475754826, %v641
    %v645 = vor.u32 %v643, %v644
    %v646 = vshll.u32 2475754826, %v640
    %v647 = vshrl.u32 2131351028, %v641
    %v648 = vor.u32 %v646, %v647
    %v649 = vshll.u32 2131351028, %v640
    %v650 = vshrl.u32 2102212464, %v641
    %v651 = vor.u32 %v649, %v650
    %v652 = vshll.u32 2102212464, %v640
    %v653 = vshrl.u32 920167782, %v641
    %v654 = vor.u32 %v652, %v653
    %v655 = vshll.u32 920167782, %v640
    %v656 = vshrl.u32 1326507024, %v641
    %v657 = vor.u32 %v655, %v656
    %vm658 = vcmp.lt.s32.totalorder %v639, 1
    %vm659 = vcmp.lt.s32.totalorder %v639, 2
    %vm660 = vcmp.lt.s32.totalorder %v639, 3
    %vm661 = vcmp.lt.s32.totalorder %v639, 4
    %v662 = vsel %vm658, %v642, %v645
    %v663 = vsel %vm661, %v651, 2102212464
    %v664 = vsel %vm660, %v648, %v663
    %v665 = vsel %vm659, %v662, %v664
    %v666 = vsel %vm658, %v645, %v648
    %v667 = vsel %vm661, %v654, 920167782
    %v668 = vsel %vm660, %v651, %v667
    %v669 = vsel %vm659, %v666, %v668
    %v670 = vsel %vm658, %v648, %v651
    %v671 = vsel %vm661, %v657, 1326507024
    %v672 = vsel %vm660, %v654, %v671
    %v673 = vsel %vm659, %v670, %v672
    %v674 = vshll.u32 %v634, 8
    %v675 = vand.u32 %v674, 65535
    %v676 = vshrl.u32 %v674, 16
    %v677 = vand.u32 %v673, 65535
    %v678 = vshrl.u32 %v673, 16
    %v679 = vmul.u32 %v675, %v677
    %v680 = vmul.u32 %v675, %v678
    %v681 = vmul.u32 %v676, %v677
    %v682 = vmul.u32 %v676, %v678
    %v683 = vshll.u32 %v680, 16
    %v684 = vshrl.u32 %v680, 16
    %v685 = vshll.u32 %v681, 16
    %v686 = vshrl.u32 %v681, 16
    %vm687 = vc.u32 %v679, %v683
    %v688 = vsel %vm687, 1, 0
    %v689 = vadd.s32 %v679, %v683
    %v690 = vadd.s32 %v682, %v688
    %vm691 = vc.u32 %v689, %v685
    %v692 = vsel %vm691, 1, 0
    %v693 = vadd.s32 %v689, %v685
    %v694 = vadd.s32 %v690, %v692
    %v695 = vadd.s32 %v694, %v684
    %v696 = vadd.s32 %v695, %v686
    %v697 = vand.u32 %v674, 65535
    %v698 = vshrl.u32 %v674, 16
    %v699 = vand.u32 %v669, 65535
    %v700 = vshrl.u32 %v669, 16
    %v701 = vmul.u32 %v697, %v699
    %v702 = vmul.u32 %v697, %v700
    %v703 = vmul.u32 %v698, %v699
    %v704 = vmul.u32 %v698, %v700
    %v705 = vshll.u32 %v702, 16
    %v706 = vshrl.u32 %v702, 16
    %v707 = vshll.u32 %v703, 16
    %v708 = vshrl.u32 %v703, 16
    %vm709 = vc.u32 %v701, %v705
    %v710 = vsel %vm709, 1, 0
    %v711 = vadd.s32 %v701, %v705
    %v712 = vadd.s32 %v704, %v710
    %vm713 = vc.u32 %v711, %v707
    %v714 = vsel %vm713, 1, 0
    %v715 = vadd.s32 %v711, %v707
    %v716 = vadd.s32 %v712, %v714
    %v717 = vadd.s32 %v716, %v706
    %v718 = vadd.s32 %v717, %v708
    %v719 = vmul.u32 %v674, %v665
    %v720 = vadd.s32 %v696, %v715
    %vm721 = vc.u32 %v696, %v715
    %v722 = vadd.s32 %v718, 1
    %v723 = vsel %vm721, %v722, %v718
    %v724 = vadd.s32 %v719, %v723
    %v725 = vadd.s32 %v724, 536870912
    %v726 = vshrl.u32 %v725, 30
    %v727 = vshll.u32 %v726, 30
    %v728 = vsub.s32 %v724, %v727
    %vm729 = vcmp.lt.s32.totalorder %v728, 0
    %v730 = vsub.s32 0, %v728
    %v731 = vsel %vm729, %v730, %v728
    %v732 = vclz %v731
    %v733 = vsub.s32 %v732, 2
    %vm734 = vcmp.gt.s32.totalorder 0, %v733
    %v735 = vsel %vm734, 0, %v733
    %v736 = vsub.s32 32, %v735
    %v737 = vshll.u32 %v728, %v735
    %v738 = vshrl.u32 %v720, %v736
    %v739 = vor.u32 %v737, %v738
    %v740 = vsub.s32 4294967266, %v735
    %v741 = vadd.s32 %v740, 127
    %v742 = vshll.u32 %v741, 23
    %v743 = vor.u32 4788187, %v742
    %v744 = vand.u32 2147483647, %v743
    %v746 = vcvt.s32.f32 %v739
    %v747 = vmul.f32 %v746, %v744
    %v748 = vxor.u32 %v747, 2147483648
    %v749 = vsel %vm628, %v748, %v747
    %v750 = vsub.s32 4, %v726
    %v751 = vsel %vm628, %v750, %v726
    %v752 = vsel %vm627, %v156, %v749
    %v753 = vsel %vm627, 0, %v751
    %v754 = vmul.f32 %v752, %v752
    %v755 = vmul.f32 %v754, -0.001358992
    %v756 = vadd.f32 %v755, 0.041655596
    %v757 = vmul.f32 %v754, %v756
    %v758 = vadd.f32 %v757, -0.4999988
    %v759 = vmul.f32 %v754, %v758
    %v760 = vadd.f32 1.0, %v759
    %v761 = vmul.f32 %v752, %v752
    %v762 = vmul.f32 %v761, -0.00019511016
    %v763 = vadd.f32 %v762, 0.008332121
    %v764 = vmul.f32 %v761, %v763
    %v765 = vadd.f32 %v764, -0.16666654
    %v766 = vmul.f32 %v761, %v765
    %v767 = vadd.f32 %v766, 1.0
    %v768 = vmul.f32 %v767, %v752
    %vm769 = vweird.f32 %v156
    %v770 = vadd.s32 %v753, 3
    %v771 = vand.u32 %v770, 3
    %vm772 = vcmp.lt.s32.totalorder %v771, 2
    %vm773 = vcmp.eq.s32.totalorder %v771, 0
    %v774 = vxor.u32 %v768, 2147483648
    %v775 = vsel %vm773, %v760, %v774
    %vm776 = vcmp.eq.s32.totalorder %v771, 2
    %v777 = vxor.u32 %v760, 2147483648
    %v778 = vsel %vm776, %v777, %v768
    %v779 = vsel %vm772, %v775, %v778
    %v780 = vsel %vm769, nan, %v779
    %v781 = vand.u32 2147483647, %v157
    %vm782 = vcmp.le.f32.partialorder %v781, 0.7853982
    %vm783 = vcmp.lt.s32.totalorder %v157, 0
    %v784 = vand.u32 %v157, 2139095040
    %v785 = vshrl.u32 %v784, 23
    %v786 = vsub.s32 %v785, 127
    %v787 = vand.u32 2147483647, %v157
    %v788 = vand.u32 %v787, 8388607
    %v789 = vor.u32 %v788, 8388608
    %v790 = vsub.s32 0, %v789
    %v791 = vadd.s32 %v786, 1
    %vm792 = vcmp.gt.s32.totalorder %v791, 0
    %v793 = vsel %vm792, %v791, 0
    %v794 = vshrl.u32 %v793, 5
    %v795 = vand.u32 %v793, 31
    %v796 = vsub.s32 32, %v795
    %v797 = vshrl.u32 683565275, %v796
    %v798 = vshll.u32 683565275, %v795
    %v799 = vshrl.u32 2475754826, %v796
    %v800 = vor.u32 %v798, %v799
    %v801 = vshll.u32 2475754826, %v795
    %v802 = vshrl.u32 2131351028, %v796
    %v803 = vor.u32 %v801, %v802
    %v804 = vshll.u32 2131351028, %v795
    %v805 = vshrl.u32 2102212464, %v796
    %v806 = vor.u32 %v804, %v805
    %v807 = vshll.u32 2102212464, %v795
    %v808 = vshrl.u32 920167782, %v796
    %v809 = vor.u32 %v807, %v808
    %v810 = vshll.u32 920167782, %v795
    %v811 = vshrl.u32 1326507024, %v796
    %v812 = vor.u32 %v810, %v811
    %vm813 = vcmp.lt.s32.totalorder %v794, 1
    %vm814 = vcmp.lt.s32.totalorder %v794, 2
    %vm815 = vcmp.lt.s32.totalorder %v794, 3
    %vm816 = vcmp.lt.s32.totalorder %v794, 4
    %v817 = vsel %vm813, %v797, %v800
    %v818 = vsel %vm816, %v806, 2102212464
    %v819 = vsel %vm815, %v803, %v818
    %v820 = vsel %vm814, %v817, %v819
    %v821 = vsel %vm813, %v800, %v803
    %v822 = vsel %vm816, %v809, 920167782
    %v823 = vsel %vm815, %v806, %v822
    %v824 = vsel %vm814, %v821, %v823
    %v825 = vsel %vm813, %v803, %v806
    %v826 = vsel %vm816, %v812, 1326507024
    %v827 = vsel %vm815, %v809, %v826
    %v828 = vsel %vm814, %v825, %v827
    %v829 = vshll.u32 %v789, 8
    %v830 = vand.u32 %v829, 65535
    %v831 = vshrl.u32 %v829, 16
    %v832 = vand.u32 %v828, 65535
    %v833 = vshrl.u32 %v828, 16
    %v834 = vmul.u32 %v830, %v832
    %v835 = vmul.u32 %v830, %v833
    %v836 = vmul.u32 %v831, %v832
    %v837 = vmul.u32 %v831, %v833
    %v838 = vshll.u32 %v835, 16
    %v839 = vshrl.u32 %v835, 16
    %v840 = vshll.u32 %v836, 16
    %v841 = vshrl.u32 %v836, 16
    %vm842 = vc.u32 %v834, %v838
    %v843 = vsel %vm842, 1, 0
    %v844 = vadd.s32 %v834, %v838
    %v845 = vadd.s32 %v837, %v843
    %vm846 = vc.u32 %v844, %v840
    %v847 = vsel %vm846, 1, 0
    %v848 = vadd.s32 %v844, %v840
    %v849 = vadd.s32 %v845, %v847
    %v850 = vadd.s32 %v849, %v839
    %v851 = vadd.s32 %v850, %v841
    %v852 = vand.u32 %v829, 65535
    %v853 = vshrl.u32 %v829, 16
    %v854 = vand.u32 %v824, 65535
    %v855 = vshrl.u32 %v824, 16
    %v856 = vmul.u32 %v852, %v854
    %v857 = vmul.u32 %v852, %v855
    %v858 = vmul.u32 %v853, %v854
    %v859 = vmul.u32 %v853, %v855
    %v860 = vshll.u32 %v857, 16
    %v861 = vshrl.u32 %v857, 16
    %v862 = vshll.u32 %v858, 16
    %v863 = vshrl.u32 %v858, 16
    %vm864 = vc.u32 %v856, %v860
    %v865 = vsel %vm864, 1, 0
    %v866 = vadd.s32 %v856, %v860
    %v867 = vadd.s32 %v859, %v865
    %vm868 = vc.u32 %v866, %v862
    %v869 = vsel %vm868, 1, 0
    %v870 = vadd.s32 %v866, %v862
    %v871 = vadd.s32 %v867, %v869
    %v872 = vadd.s32 %v871, %v861
    %v873 = vadd.s32 %v872, %v863
    %v874 = vmul.u32 %v829, %v820
    %v875 = vadd.s32 %v851, %v870
    %vm876 = vc.u32 %v851, %v870
    %v877 = vadd.s32 %v873, 1
    %v878 = vsel %vm876, %v877, %v873
    %v879 = vadd.s32 %v874, %v878
    %v880 = vadd.s32 %v879, 536870912
    %v881 = vshrl.u32 %v880, 30
    %v882 = vshll.u32 %v881, 30
    %v883 = vsub.s32 %v879, %v882
    %vm884 = vcmp.lt.s32.totalorder %v883, 0
    %v885 = vsub.s32 0, %v883
    %v886 = vsel %vm884, %v885, %v883
    %v887 = vclz %v886
    %v888 = vsub.s32 %v887, 2
    %vm889 = vcmp.gt.s32.totalorder 0, %v888
    %v890 = vsel %vm889, 0, %v888
    %v891 = vsub.s32 32, %v890
    %v892 = vshll.u32 %v883, %v890
    %v893 = vshrl.u32 %v875, %v891
    %v894 = vor.u32 %v892, %v893
    %v895 = vsub.s32 4294967266, %v890
    %v896 = vadd.s32 %v895, 127
    %v897 = vshll.u32 %v896, 23
    %v898 = vor.u32 4788187, %v897
    %v899 = vand.u32 2147483647, %v898
    %v901 = vcvt.s32.f32 %v894
    %v902 = vmul.f32 %v901, %v899
    %v903 = vxor.u32 %v902, 2147483648
    %v904 = vsel %vm783, %v903, %v902
    %v905 = vsub.s32 4, %v881
    %v906 = vsel %vm783, %v905, %v881
    %v907 = vsel %vm782, %v157, %v904
    %v908 = vsel %vm782, 0, %v906
    %v909 = vmul.f32 %v907, %v907
    %v910 = vmul.f32 %v909, -0.001358992
    %v911 = vadd.f32 %v910, 0.041655596
    %v912 = vmul.f32 %v909, %v911
    %v913 = vadd.f32 %v912, -0.4999988
    %v914 = vmul.f32 %v909, %v913
    %v915 = vadd.f32 1.0, %v914
    %v916 = vmul.f32 %v907, %v907
    %v917 = vmul.f32 %v916, -0.00019511016
    %v918 = vadd.f32 %v917, 0.008332121
    %v919 = vmul.f32 %v916, %v918
    %v920 = vadd.f32 %v919, -0.16666654
    %v921 = vmul.f32 %v916, %v920
    %v922 = vadd.f32 %v921, 1.0
    %v923 = vmul.f32 %v922, %v907
    %vm924 = vweird.f32 %v157
    %v925 = vadd.s32 %v908, 3
    %v926 = vand.u32 %v925, 3
    %vm927 = vcmp.lt.s32.totalorder %v926, 2
    %vm928 = vcmp.eq.s32.totalorder %v926, 0
    %v929 = vxor.u32 %v923, 2147483648
    %v930 = vsel %vm928, %v915, %v929
    %vm931 = vcmp.eq.s32.totalorder %v926, 2
    %v932 = vxor.u32 %v915, 2147483648
    %v933 = vsel %vm931, %v932, %v923
    %v934 = vsel %vm927, %v930, %v933
    %v935 = vsel %vm924, nan, %v934
    %v936 = vand.u32 2147483647, %v158
    %vm937 = vcmp.le.f32.partialorder %v936, 0.7853982
    %vm938 = vcmp.lt.s32.totalorder %v158, 0
    %v939 = vand.u32 %v158, 2139095040
    %v940 = vshrl.u32 %v939, 23
    %v941 = vsub.s32 %v940, 127
    %v942 = vand.u32 2147483647, %v158
    %v943 = vand.u32 %v942, 8388607
    %v944 = vor.u32 %v943, 8388608
    %v945 = vsub.s32 0, %v944
    %v946 = vadd.s32 %v941, 1
    %vm947 = vcmp.gt.s32.totalorder %v946, 0
    %v948 = vsel %vm947, %v946, 0
    %v949 = vshrl.u32 %v948, 5
    %v950 = vand.u32 %v948, 31
    %v951 = vsub.s32 32, %v950
    %v952 = vshrl.u32 683565275, %v951
    %v953 = vshll.u32 683565275, %v950
    %v954 = vshrl.u32 2475754826, %v951
    %v955 = vor.u32 %v953, %v954
    %v956 = vshll.u32 2475754826, %v950
    %v957 = vshrl.u32 2131351028, %v951
    %v958 = vor.u32 %v956, %v957
    %v959 = vshll.u32 2131351028, %v950
    %v960 = vshrl.u32 2102212464, %v951
    %v961 = vor.u32 %v959, %v960
    %v962 = vshll.u32 2102212464, %v950
    %v963 = vshrl.u32 920167782, %v951
    %v964 = vor.u32 %v962, %v963
    %v965 = vshll.u32 920167782, %v950
    %v966 = vshrl.u32 1326507024, %v951
    %v967 = vor.u32 %v965, %v966
    %vm968 = vcmp.lt.s32.totalorder %v949, 1
    %vm969 = vcmp.lt.s32.totalorder %v949, 2
    %vm970 = vcmp.lt.s32.totalorder %v949, 3
    %vm971 = vcmp.lt.s32.totalorder %v949, 4
    %v972 = vsel %vm968, %v952, %v955
    %v973 = vsel %vm971, %v961, 2102212464
    %v974 = vsel %vm970, %v958, %v973
    %v975 = vsel %vm969, %v972, %v974
    %v976 = vsel %vm968, %v955, %v958
    %v977 = vsel %vm971, %v964, 920167782
    %v978 = vsel %vm970, %v961, %v977
    %v979 = vsel %vm969, %v976, %v978
    %v980 = vsel %vm968, %v958, %v961
    %v981 = vsel %vm971, %v967, 1326507024
    %v982 = vsel %vm970, %v964, %v981
    %v983 = vsel %vm969, %v980, %v982
    %v984 = vshll.u32 %v944, 8
    %v985 = vand.u32 %v984, 65535
    %v986 = vshrl.u32 %v984, 16
    %v987 = vand.u32 %v983, 65535
    %v988 = vshrl.u32 %v983, 16
    %v989 = vmul.u32 %v985, %v987
    %v990 = vmul.u32 %v985, %v988
    %v991 = vmul.u32 %v986, %v987
    %v992 = vmul.u32 %v986, %v988
    %v993 = vshll.u32 %v990, 16
    %v994 = vshrl.u32 %v990, 16
    %v995 = vshll.u32 %v991, 16
    %v996 = vshrl.u32 %v991, 16
    %vm997 = vc.u32 %v989, %v993
    %v998 = vsel %vm997, 1, 0
    %v999 = vadd.s32 %v989, %v993
    %v1000 = vadd.s32 %v992, %v998
    %vm1001 = vc.u32 %v999, %v995
    %v1002 = vsel %vm1001, 1, 0
    %v1003 = vadd.s32 %v999, %v995
    %v1004 = vadd.s32 %v1000, %v1002
    %v1005 = vadd.s32 %v1004, %v994
    %v1006 = vadd.s32 %v1005, %v996
    %v1007 = vand.u32 %v984, 65535
    %v1008 = vshrl.u32 %v984, 16
    %v1009 = vand.u32 %v979, 65535
    %v1010 = vshrl.u32 %v979, 16
    %v1011 = vmul.u32 %v1007, %v1009
    %v1012 = vmul.u32 %v1007, %v1010
    %v1013 = vmul.u32 %v1008, %v1009
    %v1014 = vmul.u32 %v1008, %v1010
    %v1015 = vshll.u32 %v1012, 16
    %v1016 = vshrl.u32 %v1012, 16
    %v1017 = vshll.u32 %v1013, 16
    %v1018 = vshrl.u32 %v1013, 16
    %vm1019 = vc.u32 %v1011, %v1015
    %v1020 = vsel %vm1019, 1, 0
    %v1021 = vadd.s32 %v1011, %v1015
    %v1022 = vadd.s32 %v1014, %v1020
    %vm1023 = vc.u32 %v1021, %v1017
    %v1024 = vsel %vm1023, 1, 0
    %v1025 = vadd.s32 %v1021, %v1017
    %v1026 = vadd.s32 %v1022, %v1024
    %v1027 = vadd.s32 %v1026, %v1016
    %v1028 = vadd.s32 %v1027, %v1018
    %v1029 = vmul.u32 %v984, %v975
    %v1030 = vadd.s32 %v1006, %v1025
    %vm1031 = vc.u32 %v1006, %v1025
    %v1032 = vadd.s32 %v1028, 1
    %v1033 = vsel %vm1031, %v1032, %v1028
    %v1034 = vadd.s32 %v1029, %v1033
    %v1035 = vadd.s32 %v1034, 536870912
    %v1036 = vshrl.u32 %v1035, 30
    %v1037 = vshll.u32 %v1036, 30
    %v1038 = vsub.s32 %v1034, %v1037
    %vm1039 = vcmp.lt.s32.totalorder %v1038, 0
    %v1040 = vsub.s32 0, %v1038
    %v1041 = vsel %vm1039, %v1040, %v1038
    %v1042 = vclz %v1041
    %v1043 = vsub.s32 %v1042, 2
    %vm1044 = vcmp.gt.s32.totalorder 0, %v1043
    %v1045 = vsel %vm1044, 0, %v1043
    %v1046 = vsub.s32 32, %v1045
    %v1047 = vshll.u32 %v1038, %v1045
    %v1048 = vshrl.u32 %v1030, %v1046
    %v1049 = vor.u32 %v1047, %v1048
    %v1050 = vsub.s32 4294967266, %v1045
    %v1051 = vadd.s32 %v1050, 127
    %v1052 = vshll.u32 %v1051, 23
    %v1053 = vor.u32 4788187, %v1052
    %v1054 = vand.u32 2147483647, %v1053
    %v1056 = vcvt.s32.f32 %v1049
    %v1057 = vmul.f32 %v1056, %v1054
    %v1058 = vxor.u32 %v1057, 2147483648
    %v1059 = vsel %vm938, %v1058, %v1057
    %v1060 = vsub.s32 4, %v1036
    %v1061 = vsel %vm938, %v1060, %v1036
    %v1062 = vsel %vm937, %v158, %v1059
    %v1063 = vsel %vm937, 0, %v1061
    %v1064 = vmul.f32 %v1062, %v1062
    %v1065 = vmul.f32 %v1064, -0.001358992
    %v1066 = vadd.f32 %v1065, 0.041655596
    %v1067 = vmul.f32 %v1064, %v1066
    %v1068 = vadd.f32 %v1067, -0.4999988
    %v1069 = vmul.f32 %v1064, %v1068
    %v1070 = vadd.f32 1.0, %v1069
    %v1071 = vmul.f32 %v1062, %v1062
    %v1072 = vmul.f32 %v1071, -0.00019511016
    %v1073 = vadd.f32 %v1072, 0.008332121
    %v1074 = vmul.f32 %v1071, %v1073
    %v1075 = vadd.f32 %v1074, -0.16666654
    %v1076 = vmul.f32 %v1071, %v1075
    %v1077 = vadd.f32 %v1076, 1.0
    %v1078 = vmul.f32 %v1077, %v1062
    %vm1079 = vweird.f32 %v158
    %v1080 = vadd.s32 %v1063, 3
    %v1081 = vand.u32 %v1080, 3
    %vm1082 = vcmp.lt.s32.totalorder %v1081, 2
    %vm1083 = vcmp.eq.s32.totalorder %v1081, 0
    %v1084 = vxor.u32 %v1078, 2147483648
    %v1085 = vsel %vm1083, %v1070, %v1084
    %vm1086 = vcmp.eq.s32.totalorder %v1081, 2
    %v1087 = vxor.u32 %v1070, 2147483648
    %v1088 = vsel %vm1086, %v1087, %v1078
    %v1089 = vsel %vm1082, %v1085, %v1088
    %v1090 = vsel %vm1079, nan, %v1089
    %v1091 = vand.u32 2147483647, %v159
    %vm1092 = vcmp.le.f32.partialorder %v1091, 0.7853982
    %vm1093 = vcmp.lt.s32.totalorder %v159, 0
    %v1094 = vand.u32 %v159, 2139095040
    %v1095 = vshrl.u32 %v1094, 23
    %v1096 = vsub.s32 %v1095, 127
    %v1097 = vand.u32 2147483647, %v159
    %v1098 = vand.u32 %v1097, 8388607
    %v1099 = vor.u32 %v1098, 8388608
    %v1100 = vsub.s32 0, %v1099
    %v1101 = vadd.s32 %v1096, 1
    %vm1102 = vcmp.gt.s32.totalorder %v1101, 0
    %v1103 = vsel %vm1102, %v1101, 0
    %v1104 = vshrl.u32 %v1103, 5
    %v1105 = vand.u32 %v1103, 31
    %v1106 = vsub.s32 32, %v1105
    %v1107 = vshrl.u32 683565275, %v1106
    %v1108 = vshll.u32 683565275, %v1105
    %v1109 = vshrl.u32 2475754826, %v1106
    %v1110 = vor.u32 %v1108, %v1109
    %v1111 = vshll.u32 2475754826, %v1105
    %v1112 = vshrl.u32 2131351028, %v1106
    %v1113 = vor.u32 %v1111, %v1112
    %v1114 = vshll.u32 2131351028, %v1105
    %v1115 = vshrl.u32 2102212464, %v1106
    %v1116 = vor.u32 %v1114, %v1115
    %v1117 = vshll.u32 2102212464, %v1105
    %v1118 = vshrl.u32 920167782, %v1106
    %v1119 = vor.u32 %v1117, %v1118
    %v1120 = vshll.u32 920167782, %v1105
    %v1121 = vshrl.u32 1326507024, %v1106
    %v1122 = vor.u32 %v1120, %v1121
    %vm1123 = vcmp.lt.s32.totalorder %v1104, 1
    %vm1124 = vcmp.lt.s32.totalorder %v1104, 2
    %vm1125 = vcmp.lt.s32.totalorder %v1104, 3
    %vm1126 = vcmp.lt.s32.totalorder %v1104, 4
    %v1127 = vsel %vm1123, %v1107, %v1110
    %v1128 = vsel %vm1126, %v1116, 2102212464
    %v1129 = vsel %vm1125, %v1113, %v1128
    %v1130 = vsel %vm1124, %v1127, %v1129
    %v1131 = vsel %vm1123, %v1110, %v1113
    %v1132 = vsel %vm1126, %v1119, 920167782
    %v1133 = vsel %vm1125, %v1116, %v1132
    %v1134 = vsel %vm1124, %v1131, %v1133
    %v1135 = vsel %vm1123, %v1113, %v1116
    %v1136 = vsel %vm1126, %v1122, 1326507024
    %v1137 = vsel %vm1125, %v1119, %v1136
    %v1138 = vsel %vm1124, %v1135, %v1137
    %v1139 = vshll.u32 %v1099, 8
    %v1140 = vand.u32 %v1139, 65535
    %v1141 = vshrl.u32 %v1139, 16
    %v1142 = vand.u32 %v1138, 65535
    %v1143 = vshrl.u32 %v1138, 16
    %v1144 = vmul.u32 %v1140, %v1142
    %v1145 = vmul.u32 %v1140, %v1143
    %v1146 = vmul.u32 %v1141, %v1142
    %v1147 = vmul.u32 %v1141, %v1143
    %v1148 = vshll.u32 %v1145, 16
    %v1149 = vshrl.u32 %v1145, 16
    %v1150 = vshll.u32 %v1146, 16
    %v1151 = vshrl.u32 %v1146, 16
    %vm1152 = vc.u32 %v1144, %v1148
    %v1153 = vsel %vm1152, 1, 0
    %v1154 = vadd.s32 %v1144, %v1148
    %v1155 = vadd.s32 %v1147, %v1153
    %vm1156 = vc.u32 %v1154, %v1150
    %v1157 = vsel %vm1156, 1, 0
    %v1158 = vadd.s32 %v1154, %v1150
    %v1159 = vadd.s32 %v1155, %v1157
    %v1160 = vadd.s32 %v1159, %v1149
    %v1161 = vadd.s32 %v1160, %v1151
    %v1162 = vand.u32 %v1139, 65535
    %v1163 = vshrl.u32 %v1139, 16
    %v1164 = vand.u32 %v1134, 65535
    %v1165 = vshrl.u32 %v1134, 16
    %v1166 = vmul.u32 %v1162, %v1164
    %v1167 = vmul.u32 %v1162, %v1165
    %v1168 = vmul.u32 %v1163, %v1164
    %v1169 = vmul.u32 %v1163, %v1165
    %v1170 = vshll.u32 %v1167, 16
    %v1171 = vshrl.u32 %v1167, 16
    %v1172 = vshll.u32 %v1168, 16
    %v1173 = vshrl.u32 %v1168, 16
    %vm1174 = vc.u32 %v1166, %v1170
    %v1175 = vsel %vm1174, 1, 0
    %v1176 = vadd.s32 %v1166, %v1170
    %v1177 = vadd.s32 %v1169, %v1175
    %vm1178 = vc.u32 %v1176, %v1172
    %v1179 = vsel %vm1178, 1, 0
    %v1180 = vadd.s32 %v1176, %v1172
    %v1181 = vadd.s32 %v1177, %v1179
    %v1182 = vadd.s32 %v1181, %v1171
    %v1183 = vadd.s32 %v1182, %v1173
    %v1184 = vmul.u32 %v1139, %v1130
    %v1185 = vadd.s32 %v1161, %v1180
    %vm1186 = vc.u32 %v1161, %v1180
    %v1187 = vadd.s32 %v1183, 1
    %v1188 = vsel %vm1186, %v1187, %v1183
    %v1189 = vadd.s32 %v1184, %v1188
    %v1190 = vadd.s32 %v1189, 536870912
    %v1191 = vshrl.u32 %v1190, 30
    %v1192 = vshll.u32 %v1191, 30
    %v1193 = vsub.s32 %v1189, %v1192
    %vm1194 = vcmp.lt.s32.totalorder %v1193, 0
    %v1195 = vsub.s32 0, %v1193
    %v1196 = vsel %vm1194, %v1195, %v1193
    %v1197 = vclz %v1196
    %v1198 = vsub.s32 %v1197, 2
    %vm1199 = vcmp.gt.s32.totalorder 0, %v1198
    %v1200 = vsel %vm1199, 0, %v1198
    %v1201 = vsub.s32 32, %v1200
    %v1202 = vshll.u32 %v1193, %v1200
    %v1203 = vshrl.u32 %v1185, %v1201
    %v1204 = vor.u32 %v1202, %v1203
    %v1205 = vsub.s32 4294967266, %v1200
    %v1206 = vadd.s32 %v1205, 127
    %v1207 = vshll.u32 %v1206, 23
    %v1208 = vor.u32 4788187, %v1207
    %v1209 = vand.u32 2147483647, %v1208
    %v1211 = vcvt.s32.f32 %v1204
    %v1212 = vmul.f32 %v1211, %v1209
    %v1213 = vxor.u32 %v1212, 2147483648
    %v1214 = vsel %vm1093, %v1213, %v1212
    %v1215 = vsub.s32 4, %v1191
    %v1216 = vsel %vm1093, %v1215, %v1191
    %v1217 = vsel %vm1092, %v159, %v1214
    %v1218 = vsel %vm1092, 0, %v1216
    %v1219 = vmul.f32 %v1217, %v1217
    %v1220 = vmul.f32 %v1219, -0.001358992
    %v1221 = vadd.f32 %v1220, 0.041655596
    %v1222 = vmul.f32 %v1219, %v1221
    %v1223 = vadd.f32 %v1222, -0.4999988
    %v1224 = vmul.f32 %v1219, %v1223
    %v1225 = vadd.f32 1.0, %v1224
    %v1226 = vmul.f32 %v1217, %v1217
    %v1227 = vmul.f32 %v1226, -0.00019511016
    %v1228 = vadd.f32 %v1227, 0.008332121
    %v1229 = vmul.f32 %v1226, %v1228
    %v1230 = vadd.f32 %v1229, -0.16666654
    %v1231 = vmul.f32 %v1226, %v1230
    %v1232 = vadd.f32 %v1231, 1.0
    %v1233 = vmul.f32 %v1232, %v1217
    %vm1234 = vweird.f32 %v159
    %v1235 = vadd.s32 %v1218, 3
    %v1236 = vand.u32 %v1235, 3
    %vm1237 = vcmp.lt.s32.totalorder %v1236, 2
    %vm1238 = vcmp.eq.s32.totalorder %v1236, 0
    %v1239 = vxor.u32 %v1233, 2147483648
    %v1240 = vsel %vm1238, %v1225, %v1239
    %vm1241 = vcmp.eq.s32.totalorder %v1236, 2
    %v1242 = vxor.u32 %v1225, 2147483648
    %v1243 = vsel %vm1241, %v1242, %v1233
    %v1244 = vsel %vm1237, %v1240, %v1243
    %v1245 = vsel %vm1234, nan, %v1244
    %v1246 = vand.u32 2147483647, %v160
    %vm1247 = vcmp.le.f32.partialorder %v1246, 0.7853982
    %vm1248 = vcmp.lt.s32.totalorder %v160, 0
    %v1249 = vand.u32 %v160, 2139095040
    %v1250 = vshrl.u32 %v1249, 23
    %v1251 = vsub.s32 %v1250, 127
    %v1252 = vand.u32 2147483647, %v160
    %v1253 = vand.u32 %v1252, 8388607
    %v1254 = vor.u32 %v1253, 8388608
    %v1255 = vsub.s32 0, %v1254
    %v1256 = vadd.s32 %v1251, 1
    %vm1257 = vcmp.gt.s32.totalorder %v1256, 0
    %v1258 = vsel %vm1257, %v1256, 0
    %v1259 = vshrl.u32 %v1258, 5
    %v1260 = vand.u32 %v1258, 31
    %v1261 = vsub.s32 32, %v1260
    %v1262 = vshrl.u32 683565275, %v1261
    %v1263 = vshll.u32 683565275, %v1260
    %v1264 = vshrl.u32 2475754826, %v1261
    %v1265 = vor.u32 %v1263, %v1264
    %v1266 = vshll.u32 2475754826, %v1260
    %v1267 = vshrl.u32 2131351028, %v1261
    %v1268 = vor.u32 %v1266, %v1267
    %v1269 = vshll.u32 2131351028, %v1260
    %v1270 = vshrl.u32 2102212464, %v1261
    %v1271 = vor.u32 %v1269, %v1270
    %v1272 = vshll.u32 2102212464, %v1260
    %v1273 = vshrl.u32 920167782, %v1261
    %v1274 = vor.u32 %v1272, %v1273
    %v1275 = vshll.u32 920167782, %v1260
    %v1276 = vshrl.u32 1326507024, %v1261
    %v1277 = vor.u32 %v1275, %v1276
    %vm1278 = vcmp.lt.s32.totalorder %v1259, 1
    %vm1279 = vcmp.lt.s32.totalorder %v1259, 2
    %vm1280 = vcmp.lt.s32.totalorder %v1259, 3
    %vm1281 = vcmp.lt.s32.totalorder %v1259, 4
    %v1282 = vsel %vm1278, %v1262, %v1265
    %v1283 = vsel %vm1281, %v1271, 2102212464
    %v1284 = vsel %vm1280, %v1268, %v1283
    %v1285 = vsel %vm1279, %v1282, %v1284
    %v1286 = vsel %vm1278, %v1265, %v1268
    %v1287 = vsel %vm1281, %v1274, 920167782
    %v1288 = vsel %vm1280, %v1271, %v1287
    %v1289 = vsel %vm1279, %v1286, %v1288
    %v1290 = vsel %vm1278, %v1268, %v1271
    %v1291 = vsel %vm1281, %v1277, 1326507024
    %v1292 = vsel %vm1280, %v1274, %v1291
    %v1293 = vsel %vm1279, %v1290, %v1292
    %v1294 = vshll.u32 %v1254, 8
    %v1295 = vand.u32 %v1294, 65535
    %v1296 = vshrl.u32 %v1294, 16
    %v1297 = vand.u32 %v1293, 65535
    %v1298 = vshrl.u32 %v1293, 16
    %v1299 = vmul.u32 %v1295, %v1297
    %v1300 = vmul.u32 %v1295, %v1298
    %v1301 = vmul.u32 %v1296, %v1297
    %v1302 = vmul.u32 %v1296, %v1298
    %v1303 = vshll.u32 %v1300, 16
    %v1304 = vshrl.u32 %v1300, 16
    %v1305 = vshll.u32 %v1301, 16
    %v1306 = vshrl.u32 %v1301, 16
    %vm1307 = vc.u32 %v1299, %v1303
    %v1308 = vsel %vm1307, 1, 0
    %v1309 = vadd.s32 %v1299, %v1303
    %v1310 = vadd.s32 %v1302, %v1308
    %vm1311 = vc.u32 %v1309, %v1305
    %v1312 = vsel %vm1311, 1, 0
    %v1313 = vadd.s32 %v1309, %v1305
    %v1314 = vadd.s32 %v1310, %v1312
    %v1315 = vadd.s32 %v1314, %v1304
    %v1316 = vadd.s32 %v1315, %v1306
    %v1317 = vand.u32 %v1294, 65535
    %v1318 = vshrl.u32 %v1294, 16
    %v1319 = vand.u32 %v1289, 65535
    %v1320 = vshrl.u32 %v1289, 16
    %v1321 = vmul.u32 %v1317, %v1319
    %v1322 = vmul.u32 %v1317, %v1320
    %v1323 = vmul.u32 %v1318, %v1319
    %v1324 = vmul.u32 %v1318, %v1320
    %v1325 = vshll.u32 %v1322, 16
    %v1326 = vshrl.u32 %v1322, 16
    %v1327 = vshll.u32 %v1323, 16
    %v1328 = vshrl.u32 %v1323, 16
    %vm1329 = vc.u32 %v1321, %v1325
    %v1330 = vsel %vm1329, 1, 0
    %v1331 = vadd.s32 %v1321, %v1325
    %v1332 = vadd.s32 %v1324, %v1330
    %vm1333 = vc.u32 %v1331, %v1327
    %v1334 = vsel %vm1333, 1, 0
    %v1335 = vadd.s32 %v1331, %v1327
    %v1336 = vadd.s32 %v1332, %v1334
    %v1337 = vadd.s32 %v1336, %v1326
    %v1338 = vadd.s32 %v1337, %v1328
    %v1339 = vmul.u32 %v1294, %v1285
    %v1340 = vadd.s32 %v1316, %v1335
    %vm1341 = vc.u32 %v1316, %v1335
    %v1342 = vadd.s32 %v1338, 1
    %v1343 = vsel %vm1341, %v1342, %v1338
    %v1344 = vadd.s32 %v1339, %v1343
    %v1345 = vadd.s32 %v1344, 536870912
    %v1346 = vshrl.u32 %v1345, 30
    %v1347 = vshll.u32 %v1346, 30
    %v1348 = vsub.s32 %v1344, %v1347
    %vm1349 = vcmp.lt.s32.totalorder %v1348, 0
    %v1350 = vsub.s32 0, %v1348
    %v1351 = vsel %vm1349, %v1350, %v1348
    %v1352 = vclz %v1351
    %v1353 = vsub.s32 %v1352, 2
    %vm1354 = vcmp.gt.s32.totalorder 0, %v1353
    %v1355 = vsel %vm1354, 0, %v1353
    %v1356 = vsub.s32 32, %v1355
    %v1357 = vshll.u32 %v1348, %v1355
    %v1358 = vshrl.u32 %v1340, %v1356
    %v1359 = vor.u32 %v1357, %v1358
    %v1360 = vsub.s32 4294967266, %v1355
    %v1361 = vadd.s32 %v1360, 127
    %v1362 = vshll.u32 %v1361, 23
    %v1363 = vor.u32 4788187, %v1362
    %v1364 = vand.u32 2147483647, %v1363
    %v1366 = vcvt.s32.f32 %v1359
    %v1367 = vmul.f32 %v1366, %v1364
    %v1368 = vxor.u32 %v1367, 2147483648
    %v1369 = vsel %vm1248, %v1368, %v1367
    %v1370 = vsub.s32 4, %v1346
    %v1371 = vsel %vm1248, %v1370, %v1346
    %v1372 = vsel %vm1247, %v160, %v1369
    %v1373 = vsel %vm1247, 0, %v1371
    %v1374 = vmul.f32 %v1372, %v1372
    %v1375 = vmul.f32 %v1374, -0.001358992
    %v1376 = vadd.f32 %v1375, 0.041655596
    %v1377 = vmul.f32 %v1374, %v1376
    %v1378 = vadd.f32 %v1377, -0.4999988
    %v1379 = vmul.f32 %v1374, %v1378
    %v1380 = vadd.f32 1.0, %v1379
    %v1381 = vmul.f32 %v1372, %v1372
    %v1382 = vmul.f32 %v1381, -0.00019511016
    %v1383 = vadd.f32 %v1382, 0.008332121
    %v1384 = vmul.f32 %v1381, %v1383
    %v1385 = vadd.f32 %v1384, -0.16666654
    %v1386 = vmul.f32 %v1381, %v1385
    %v1387 = vadd.f32 %v1386, 1.0
    %v1388 = vmul.f32 %v1387, %v1372
    %vm1389 = vweird.f32 %v160
    %v1390 = vadd.s32 %v1373, 3
    %v1391 = vand.u32 %v1390, 3
    %vm1392 = vcmp.lt.s32.totalorder %v1391, 2
    %vm1393 = vcmp.eq.s32.totalorder %v1391, 0
    %v1394 = vxor.u32 %v1388, 2147483648
    %v1395 = vsel %vm1393, %v1380, %v1394
    %vm1396 = vcmp.eq.s32.totalorder %v1391, 2
    %v1397 = vxor.u32 %v1380, 2147483648
    %v1398 = vsel %vm1396, %v1397, %v1388
    %v1399 = vsel %vm1392, %v1395, %v1398
    %v1400 = vsel %vm1389, nan, %v1399
    %v1401 = vld [vmem:[#allocation7] sm:$0xff]
    %v1402 = vld [vmem:[#allocation7 + $0x8] sm:$0xff]
    %v1403 = vld [vmem:[#allocation7 + $0x10] sm:$0xff]
    %v1404 = vld [vmem:[#allocation7 + $0x18] sm:$0xff]
    %v1405 = vld [vmem:[#allocation7 + $0x20] sm:$0xff]
    %v1406 = vld [vmem:[#allocation7 + $0x28] sm:$0xff]
    %v1407 = vld [vmem:[#allocation7 + $0x30] sm:$0xff]
    %v1408 = vld [vmem:[#allocation7 + $0x38] sm:$0xff]
    %v1409 = vld [vmem:[#allocation7 + $0x40] sm:$0xff]
    %v1410 = vld [vmem:[#allocation7 + $0x48] sm:$0xff]
    %v1411 = vld [vmem:[#allocation7 + $0x50] sm:$0xff]
    %v1412 = vld [vmem:[#allocation7 + $0x58] sm:$0xff]
    %v1413 = vld [vmem:[#allocation7 + $0x60] sm:$0xff]
    %v1414 = vld [vmem:[#allocation7 + $0x68] sm:$0xff]
    %v1415 = vld [vmem:[#allocation7 + $0x70] sm:$0xff]
    %v1416 = vld [vmem:[#allocation7 + $0x78] sm:$0xff]
    %v1417 = vld [vmem:[#allocation7 + $0x80] sm:$0xff]
    %v1418 = vld [vmem:[#allocation7 + $0x88] sm:$0xff]
    %v1419 = vld [vmem:[#allocation7 + $0x90] sm:$0xff]
    %v1420 = vld [vmem:[#allocation7 + $0x98] sm:$0xff]
    %v1421 = vld [vmem:[#allocation7 + $0xa0] sm:$0xff]
    %v1422 = vld [vmem:[#allocation7 + $0xa8] sm:$0xff]
    %v1423 = vld [vmem:[#allocation7 + $0xb0] sm:$0xff]
    %v1424 = vld [vmem:[#allocation7 + $0xb8] sm:$0xff]
    %v1425 = vld [vmem:[#allocation7 + $0xc0] sm:$0xff]
    %v1426 = vld [vmem:[#allocation7 + $0xc8] sm:$0xff]
    %v1427 = vld [vmem:[#allocation7 + $0xd0] sm:$0xff]
    %v1428 = vld [vmem:[#allocation7 + $0xd8] sm:$0xff]
    %v1429 = vld [vmem:[#allocation7 + $0xe0] sm:$0xff]
    %v1430 = vld [vmem:[#allocation7 + $0xe8] sm:$0xff]
    %v1431 = vld [vmem:[#allocation7 + $0xf0] sm:$0xff]
    %v1432 = vld [vmem:[#allocation7 + $0xf8] sm:$0xff]
    %v1433 = vld [vmem:[#allocation7 + $0x100] sm:$0xff]
    %v1434 = vld [vmem:[#allocation7 + $0x108] sm:$0xff]
    %v1435 = vld [vmem:[#allocation7 + $0x110] sm:$0xff]
    %v1436 = vld [vmem:[#allocation7 + $0x118] sm:$0xff]
    %v1437 = vld [vmem:[#allocation7 + $0x120] sm:$0xff]
    %v1438 = vld [vmem:[#allocation7 + $0x128] sm:$0xff]
    %v1439 = vld [vmem:[#allocation7 + $0x130] sm:$0xff]
    %v1440 = vld [vmem:[#allocation7 + $0x138] sm:$0xff]
    %v1441 = vld [vmem:[#allocation7 + $0x140] sm:$0xff]
    %v1442 = vld [vmem:[#allocation7 + $0x148] sm:$0xff]
    %v1443 = vld [vmem:[#allocation7 + $0x150] sm:$0xff]
    %v1444 = vld [vmem:[#allocation7 + $0x158] sm:$0xff]
    %v1445 = vld [vmem:[#allocation7 + $0x160] sm:$0xff]
    %v1446 = vld [vmem:[#allocation7 + $0x168] sm:$0xff]
    %v1447 = vld [vmem:[#allocation7 + $0x170] sm:$0xff]
    %v1448 = vld [vmem:[#allocation7 + $0x178] sm:$0xff]
    %v1449 = vld [vmem:[#allocation7 + $0x180] sm:$0xff]
    %v1450 = vld [vmem:[#allocation7 + $0x188] sm:$0xff]
    %v1451 = vld [vmem:[#allocation7 + $0x190] sm:$0xff]
    %v1452 = vld [vmem:[#allocation7 + $0x198] sm:$0xff]
    %v1453 = vld [vmem:[#allocation7 + $0x1a0] sm:$0xff]
    %v1454 = vld [vmem:[#allocation7 + $0x1a8] sm:$0xff]
    %v1455 = vld [vmem:[#allocation7 + $0x1b0] sm:$0xff]
    %v1456 = vld [vmem:[#allocation7 + $0x1b8] sm:$0xff]
    %v1457 = vld [vmem:[#allocation7 + $0x1c0] sm:$0xff]
    %v1458 = vld [vmem:[#allocation7 + $0x1c8] sm:$0xff]
    %v1459 = vld [vmem:[#allocation7 + $0x1d0] sm:$0xff]
    %v1460 = vld [vmem:[#allocation7 + $0x1d8] sm:$0xff]
    %v1461 = vld [vmem:[#allocation7 + $0x1e0] sm:$0xff]
    %v1462 = vld [vmem:[#allocation7 + $0x1e8] sm:$0xff]
    %v1463 = vld [vmem:[#allocation7 + $0x1f0] sm:$0xff]
    %v1464 = vld [vmem:[#allocation7 + $0x1f8] sm:$0xff]
    %v1465 = vld [vmem:[#allocation7 + $0x200] sm:$0xff]
    %v1466 = vld [vmem:[#allocation7 + $0x208] sm:$0xff]
    %v1467 = vld [vmem:[#allocation7 + $0x210] sm:$0xff]
    %v1468 = vld [vmem:[#allocation7 + $0x218] sm:$0xff]
    %v1469 = vld [vmem:[#allocation7 + $0x220] sm:$0xff]
    %v1470 = vld [vmem:[#allocation7 + $0x228] sm:$0xff]
    %v1471 = vld [vmem:[#allocation7 + $0x230] sm:$0xff]
    %v1472 = vld [vmem:[#allocation7 + $0x238] sm:$0xff]
    %v1473 = vld [vmem:[#allocation7 + $0x240] sm:$0xff]
    %v1474 = vld [vmem:[#allocation7 + $0x248] sm:$0xff]
    %v1475 = vld [vmem:[#allocation7 + $0x250] sm:$0xff]
    %v1476 = vld [vmem:[#allocation7 + $0x258] sm:$0xff]
    %v1477 = vld [vmem:[#allocation7 + $0x260] sm:$0xff]
    %v1478 = vld [vmem:[#allocation7 + $0x268] sm:$0xff]
    %v1479 = vld [vmem:[#allocation7 + $0x270] sm:$0xff]
    %v1480 = vld [vmem:[#allocation7 + $0x278] sm:$0xff]
    %v1481 = vld [vmem:[#allocation7 + $0x280] sm:$0xff]
    %v1482 = vld [vmem:[#allocation7 + $0x288] sm:$0xff]
    %v1483 = vld [vmem:[#allocation7 + $0x290] sm:$0xff]
    %v1484 = vld [vmem:[#allocation7 + $0x298] sm:$0xff]
    %v1485 = vld [vmem:[#allocation7 + $0x2a0] sm:$0xff]
    %v1486 = vld [vmem:[#allocation7 + $0x2a8] sm:$0xff]
    %v1487 = vld [vmem:[#allocation7 + $0x2b0] sm:$0xff]
    %v1488 = vld [vmem:[#allocation7 + $0x2b8] sm:$0xff]
    %v1489 = vld [vmem:[#allocation7 + $0x2c0] sm:$0xff]
    %v1490 = vld [vmem:[#allocation7 + $0x2c8] sm:$0xff]
    %v1491 = vld [vmem:[#allocation7 + $0x2d0] sm:$0xff]
    %v1492 = vld [vmem:[#allocation7 + $0x2d8] sm:$0xff]
    %v1493 = vld [vmem:[#allocation7 + $0x2e0] sm:$0xff]
    %v1494 = vld [vmem:[#allocation7 + $0x2e8] sm:$0xff]
    %v1495 = vld [vmem:[#allocation7 + $0x2f0] sm:$0xff]
    %v1496 = vld [vmem:[#allocation7 + $0x2f8] sm:$0xff]
    %v1497 = vld [vmem:[#allocation7 + $0x300] sm:$0xff]
    %v1498 = vld [vmem:[#allocation7 + $0x308] sm:$0xff]
    %v1499 = vld [vmem:[#allocation7 + $0x310] sm:$0xff]
    %v1500 = vld [vmem:[#allocation7 + $0x318] sm:$0xff]
    %v1501 = vld [vmem:[#allocation7 + $0x320] sm:$0xff]
    %v1502 = vld [vmem:[#allocation7 + $0x328] sm:$0xff]
    %v1503 = vld [vmem:[#allocation7 + $0x330] sm:$0xff]
    %v1504 = vld [vmem:[#allocation7 + $0x338] sm:$0xff]
    %v1505 = vld [vmem:[#allocation7 + $0x340] sm:$0xff]
    %v1506 = vld [vmem:[#allocation7 + $0x348] sm:$0xff]
    %v1507 = vld [vmem:[#allocation7 + $0x350] sm:$0xff]
    %v1508 = vld [vmem:[#allocation7 + $0x358] sm:$0xff]
    %v1509 = vld [vmem:[#allocation7 + $0x360] sm:$0xff]
    %v1510 = vld [vmem:[#allocation7 + $0x368] sm:$0xff]
    %v1511 = vld [vmem:[#allocation7 + $0x370] sm:$0xff]
    %v1512 = vld [vmem:[#allocation7 + $0x378] sm:$0xff]
    %v1513 = vld [vmem:[#allocation7 + $0x380] sm:$0xff]
    %v1514 = vld [vmem:[#allocation7 + $0x388] sm:$0xff]
    %v1515 = vld [vmem:[#allocation7 + $0x390] sm:$0xff]
    %v1516 = vld [vmem:[#allocation7 + $0x398] sm:$0xff]
    %v1517 = vld [vmem:[#allocation7 + $0x3a0] sm:$0xff]
    %v1518 = vld [vmem:[#allocation7 + $0x3a8] sm:$0xff]
    %v1519 = vld [vmem:[#allocation7 + $0x3b0] sm:$0xff]
    %v1520 = vld [vmem:[#allocation7 + $0x3b8] sm:$0xff]
    %v1521 = vld [vmem:[#allocation7 + $0x3c0] sm:$0xff]
    %v1522 = vld [vmem:[#allocation7 + $0x3c8] sm:$0xff]
    %v1523 = vld [vmem:[#allocation7 + $0x3d0] sm:$0xff]
    %v1524 = vld [vmem:[#allocation7 + $0x3d8] sm:$0xff]
    %v1525 = vld [vmem:[#allocation7 + $0x3e0] sm:$0xff]
    %v1526 = vld [vmem:[#allocation7 + $0x3e8] sm:$0xff]
    %v1527 = vld [vmem:[#allocation7 + $0x3f0] sm:$0xff]
    %v1528 = vld [vmem:[#allocation7 + $0x3f8] sm:$0xff]
    %1529 = vmatpush.msra.mxu0 %v1521
    %1530 = vmatpush.msra.mxu0 %v1513
    %1531 = vmatpush.msra.mxu0 %v1505
    %1532 = vmatpush.msra.mxu0 %v1497
    %1533 = vmatpush.msra.mxu0 %v1489
    %1534 = vmatpush.msra.mxu0 %v1481
    %1535 = vmatpush.msra.mxu0 %v1473
    %1536 = vmatpush.msra.mxu0 %v1465
    %1537 = vmatpush.msra.mxu0 %v1457
    %1538 = vmatpush.msra.mxu0 %v1449
    %1539 = vmatpush.msra.mxu0 %v1441
    %1540 = vmatpush.msra.mxu0 %v1433
    %1541 = vmatpush.msra.mxu0 %v1425
    %1542 = vmatpush.msra.mxu0 %v1417
    %1543 = vmatpush.msra.mxu0 %v1409
    %1544 = vmatpush.msra.mxu0 %v1401
    %1545 = vmatmul.f32.gmra.mxu0 %v102
    %v1546 = vpop.f32.mrf.mxu0
    %v1547 = vadd.f32 %v315, %v1546
    %1548 = vdwg.mxu0
    %1549 = vmatpush.msra.mxu0 %v1522
    %1550 = vmatpush.msra.mxu0 %v1514
    %1551 = vmatpush.msra.mxu0 %v1506
    %1552 = vmatpush.msra.mxu0 %v1498
    %1553 = vmatpush.msra.mxu0 %v1490
    %1554 = vmatpush.msra.mxu0 %v1482
    %1555 = vmatpush.msra.mxu0 %v1474
    %1556 = vmatpush.msra.mxu0 %v1466
    %1557 = vmatpush.msra.mxu0 %v1458
    %1558 = vmatpush.msra.mxu0 %v1450
    %1559 = vmatpush.msra.mxu0 %v1442
    %1560 = vmatpush.msra.mxu0 %v1434
    %1561 = vmatpush.msra.mxu0 %v1426
    %1562 = vmatpush.msra.mxu0 %v1418
    %1563 = vmatpush.msra.mxu0 %v1410
    %1564 = vmatpush.msra.mxu0 %v1402
    %1565 = vmatmul.f32.gmra.mxu0 %v102
    %v1566 = vpop.f32.mrf.mxu0
    %v1567 = vadd.f32 %v470, %v1566
    %1568 = vdwg.mxu0
    %1569 = vmatpush.msra.mxu0 %v1523
    %1570 = vmatpush.msra.mxu0 %v1515
    %1571 = vmatpush.msra.mxu0 %v1507
    %1572 = vmatpush.msra.mxu0 %v1499
    %1573 = vmatpush.msra.mxu0 %v1491
    %1574 = vmatpush.msra.mxu0 %v1483
    %1575 = vmatpush.msra.mxu0 %v1475
    %1576 = vmatpush.msra.mxu0 %v1467
    %1577 = vmatpush.msra.mxu0 %v1459
    %1578 = vmatpush.msra.mxu0 %v1451
    %1579 = vmatpush.msra.mxu0 %v1443
    %1580 = vmatpush.msra.mxu0 %v1435
    %1581 = vmatpush.msra.mxu0 %v1427
    %1582 = vmatpush.msra.mxu0 %v1419
    %1583 = vmatpush.msra.mxu0 %v1411
    %1584 = vmatpush.msra.mxu0 %v1403
    %1585 = vmatmul.f32.gmra.mxu0 %v102
    %v1586 = vpop.f32.mrf.mxu0
    %v1587 = vadd.f32 %v625, %v1586
    %1588 = vdwg.mxu0
    %1589 = vmatpush.msra.mxu0 %v1524
    %1590 = vmatpush.msra.mxu0 %v1516
    %1591 = vmatpush.msra.mxu0 %v1508
    %1592 = vmatpush.msra.mxu0 %v1500
    %1593 = vmatpush.msra.mxu0 %v1492
    %1594 = vmatpush.msra.mxu0 %v1484
    %1595 = vmatpush.msra.mxu0 %v1476
    %1596 = vmatpush.msra.mxu0 %v1468
    %1597 = vmatpush.msra.mxu0 %v1460
    %1598 = vmatpush.msra.mxu0 %v1452
    %1599 = vmatpush.msra.mxu0 %v1444
    %1600 = vmatpush.msra.mxu0 %v1436
    %1601 = vmatpush.msra.mxu0 %v1428
    %1602 = vmatpush.msra.mxu0 %v1420
    %1603 = vmatpush.msra.mxu0 %v1412
    %1604 = vmatpush.msra.mxu0 %v1404
    %1605 = vmatmul.f32.gmra.mxu0 %v102
    %v1606 = vpop.f32.mrf.mxu0
    %v1607 = vadd.f32 %v780, %v1606
    %1608 = vdwg.mxu0
    %1609 = vmatpush.msra.mxu0 %v1525
    %1610 = vmatpush.msra.mxu0 %v1517
    %1611 = vmatpush.msra.mxu0 %v1509
    %1612 = vmatpush.msra.mxu0 %v1501
    %1613 = vmatpush.msra.mxu0 %v1493
    %1614 = vmatpush.msra.mxu0 %v1485
    %1615 = vmatpush.msra.mxu0 %v1477
    %1616 = vmatpush.msra.mxu0 %v1469
    %1617 = vmatpush.msra.mxu0 %v1461
    %1618 = vmatpush.msra.mxu0 %v1453
    %1619 = vmatpush.msra.mxu0 %v1445
    %1620 = vmatpush.msra.mxu0 %v1437
    %1621 = vmatpush.msra.mxu0 %v1429
    %1622 = vmatpush.msra.mxu0 %v1421
    %1623 = vmatpush.msra.mxu0 %v1413
    %1624 = vmatpush.msra.mxu0 %v1405
    %1625 = vmatmul.f32.gmra.mxu0 %v102
    %v1626 = vpop.f32.mrf.mxu0
    %v1627 = vadd.f32 %v935, %v1626
    %1628 = vdwg.mxu0
    %1629 = vmatpush.msra.mxu0 %v1526
    %1630 = vmatpush.msra.mxu0 %v1518
    %1631 = vmatpush.msra.mxu0 %v1510
    %1632 = vmatpush.msra.mxu0 %v1502
    %1633 = vmatpush.msra.mxu0 %v1494
    %1634 = vmatpush.msra.mxu0 %v1486
    %1635 = vmatpush.msra.mxu0 %v1478
    %1636 = vmatpush.msra.mxu0 %v1470
    %1637 = vmatpush.msra.mxu0 %v1462
    %1638 = vmatpush.msra.mxu0 %v1454
    %1639 = vmatpush.msra.mxu0 %v1446
    %1640 = vmatpush.msra.mxu0 %v1438
    %1641 = vmatpush.msra.mxu0 %v1430
    %1642 = vmatpush.msra.mxu0 %v1422
    %1643 = vmatpush.msra.mxu0 %v1414
    %1644 = vmatpush.msra.mxu0 %v1406
    %1645 = vmatmul.f32.gmra.mxu0 %v102
    %v1646 = vpop.f32.mrf.mxu0
    %v1647 = vadd.f32 %v1090, %v1646
    %1648 = vdwg.mxu0
    %1649 = vmatpush.msra.mxu0 %v1527
    %1650 = vmatpush.msra.mxu0 %v1519
    %1651 = vmatpush.msra.mxu0 %v1511
    %1652 = vmatpush.msra.mxu0 %v1503
    %1653 = vmatpush.msra.mxu0 %v1495
    %1654 = vmatpush.msra.mxu0 %v1487
    %1655 = vmatpush.msra.mxu0 %v1479
    %1656 = vmatpush.msra.mxu0 %v1471
    %1657 = vmatpush.msra.mxu0 %v1463
    %1658 = vmatpush.msra.mxu0 %v1455
    %1659 = vmatpush.msra.mxu0 %v1447
    %1660 = vmatpush.msra.mxu0 %v1439
    %1661 = vmatpush.msra.mxu0 %v1431
    %1662 = vmatpush.msra.mxu0 %v1423
    %1663 = vmatpush.msra.mxu0 %v1415
    %1664 = vmatpush.msra.mxu0 %v1407
    %1665 = vmatmul.f32.gmra.mxu0 %v102
    %v1666 = vpop.f32.mrf.mxu0
    %v1667 = vadd.f32 %v1245, %v1666
    %1668 = vdwg.mxu0
    %1669 = vmatpush.msra.mxu0 %v1528
    %1670 = vmatpush.msra.mxu0 %v1520
    %1671 = vmatpush.msra.mxu0 %v1512
    %1672 = vmatpush.msra.mxu0 %v1504
    %1673 = vmatpush.msra.mxu0 %v1496
    %1674 = vmatpush.msra.mxu0 %v1488
    %1675 = vmatpush.msra.mxu0 %v1480
    %1676 = vmatpush.msra.mxu0 %v1472
    %1677 = vmatpush.msra.mxu0 %v1464
    %1678 = vmatpush.msra.mxu0 %v1456
    %1679 = vmatpush.msra.mxu0 %v1448
    %1680 = vmatpush.msra.mxu0 %v1440
    %1681 = vmatpush.msra.mxu0 %v1432
    %1682 = vmatpush.msra.mxu0 %v1424
    %1683 = vmatpush.msra.mxu0 %v1416
    %1684 = vmatpush.msra.mxu0 %v1408
    %1685 = vmatmul.f32.gmra.mxu0 %v102
    %v1686 = vpop.f32.mrf.mxu0
    %v1687 = vadd.f32 %v1400, %v1686
    %1688 = vdwg.mxu0
    %v1689 = vld [vmem:[#allocation8] sm:$0xff]
    %v1691 = vperm.slane %v1689, 0
    %v1692 = vperm.slane %v1689, 1
    %v1693 = vperm.slane %v1689, 2
    %v1694 = vperm.slane %v1689, 3
    %v1695 = vperm.slane %v1689, 4
    %v1696 = vperm.slane %v1689, 5
    %v1697 = vperm.slane %v1689, 6
    %v1698 = vperm.slane %v1689, 7
    %v1707 = vadd.f32 %v1547, %v1691
    %v1708 = vadd.f32 %v1567, %v1692
    %v1709 = vadd.f32 %v1587, %v1693
    %v1710 = vadd.f32 %v1607, %v1694
    %v1711 = vadd.f32 %v1627, %v1695
    %v1712 = vadd.f32 %v1647, %v1696
    %v1713 = vadd.f32 %v1667, %v1697
    %v1714 = vadd.f32 %v1687, %v1698
    %v1715 = vxor.u32 %v1707, 2147483648
    %v1716 = vxor.u32 %v1708, 2147483648
    %v1717 = vxor.u32 %v1709, 2147483648
    %v1718 = vxor.u32 %v1710, 2147483648
    %v1719 = vxor.u32 %v1711, 2147483648
    %v1720 = vxor.u32 %v1712, 2147483648
    %v1721 = vxor.u32 %v1713, 2147483648
    %v1722 = vxor.u32 %v1714, 2147483648
    %v1723 = vmul.f32 %v1715, 1.442695
    %v1724 = vpow.pop %v1723
    %v1725 = vmul.f32 %v1716, 1.442695
    %v1726 = vpow.pop %v1725
    %v1727 = vmul.f32 %v1717, 1.442695
    %v1728 = vpow.pop %v1727
    %v1729 = vmul.f32 %v1718, 1.442695
    %v1730 = vpow.pop %v1729
    %v1731 = vmul.f32 %v1719, 1.442695
    %v1732 = vpow.pop %v1731
    %v1733 = vmul.f32 %v1720, 1.442695
    %v1734 = vpow.pop %v1733
    %v1735 = vmul.f32 %v1721, 1.442695
    %v1736 = vpow.pop %v1735
    %v1737 = vmul.f32 %v1722, 1.442695
    %v1738 = vpow.pop %v1737
    %v1739 = vadd.f32 %v1724, 1.0
    %v1740 = vadd.f32 %v1726, 1.0
    %v1741 = vadd.f32 %v1728, 1.0
    %v1742 = vadd.f32 %v1730, 1.0
    %v1743 = vadd.f32 %v1732, 1.0
    %v1744 = vadd.f32 %v1734, 1.0
    %v1745 = vadd.f32 %v1736, 1.0
    %v1746 = vadd.f32 %v1738, 1.0
    %v1747 = vrcp.pop %v1739
    %v1748 = vmul.f32 %v1739, %v1747
    %v1749 = vsub.f32 1.0, %v1748
    %v1750 = vmul.f32 %v1747, %v1749
    %v1751 = vadd.f32 %v1747, %v1750
    %vm1752 = vweird.f32 %v1739
    %vm1753 = vweird.f32 %v1747
    %vm1754 = vmor %vm1752, %vm1753
    %v1755 = vsel %vm1754, %v1747, %v1751
    %v1756 = vand.u32 2147483647, %v1739
    %vm1757 = vcmp.eq.f32.partialorder %v1756, 8.507059e+37
    %v1758 = vand.u32 %v1739, 2147483648
    %v1759 = vor.u32 1.1754944e-38, %v1758
    %v1760 = vsel %vm1757, %v1759, %v1755
    %v1761 = vmul.f32 1.0, %v1760
    %v1762 = vrcp.pop %v1740
    %v1763 = vmul.f32 %v1740, %v1762
    %v1764 = vsub.f32 1.0, %v1763
    %v1765 = vmul.f32 %v1762, %v1764
    %v1766 = vadd.f32 %v1762, %v1765
    %vm1767 = vweird.f32 %v1740
    %vm1768 = vweird.f32 %v1762
    %vm1769 = vmor %vm1767, %vm1768
    %v1770 = vsel %vm1769, %v1762, %v1766
    %v1771 = vand.u32 2147483647, %v1740
    %vm1772 = vcmp.eq.f32.partialorder %v1771, 8.507059e+37
    %v1773 = vand.u32 %v1740, 2147483648
    %v1774 = vor.u32 1.1754944e-38, %v1773
    %v1775 = vsel %vm1772, %v1774, %v1770
    %v1776 = vmul.f32 1.0, %v1775
    %v1777 = vrcp.pop %v1741
    %v1778 = vmul.f32 %v1741, %v1777
    %v1779 = vsub.f32 1.0, %v1778
    %v1780 = vmul.f32 %v1777, %v1779
    %v1781 = vadd.f32 %v1777, %v1780
    %vm1782 = vweird.f32 %v1741
    %vm1783 = vweird.f32 %v1777
    %vm1784 = vmor %vm1782, %vm1783
    %v1785 = vsel %vm1784, %v1777, %v1781
    %v1786 = vand.u32 2147483647, %v1741
    %vm1787 = vcmp.eq.f32.partialorder %v1786, 8.507059e+37
    %v1788 = vand.u32 %v1741, 2147483648
    %v1789 = vor.u32 1.1754944e-38, %v1788
    %v1790 = vsel %vm1787, %v1789, %v1785
    %v1791 = vmul.f32 1.0, %v1790
    %v1792 = vrcp.pop %v1742
    %v1793 = vmul.f32 %v1742, %v1792
    %v1794 = vsub.f32 1.0, %v1793
    %v1795 = vmul.f32 %v1792, %v1794
    %v1796 = vadd.f32 %v1792, %v1795
    %vm1797 = vweird.f32 %v1742
    %vm1798 = vweird.f32 %v1792
    %vm1799 = vmor %vm1797, %vm1798
    %v1800 = vsel %vm1799, %v1792, %v1796
    %v1801 = vand.u32 2147483647, %v1742
    %vm1802 = vcmp.eq.f32.partialorder %v1801, 8.507059e+37
    %v1803 = vand.u32 %v1742, 2147483648
    %v1804 = vor.u32 1.1754944e-38, %v1803
    %v1805 = vsel %vm1802, %v1804, %v1800
    %v1806 = vmul.f32 1.0, %v1805
    %v1807 = vrcp.pop %v1743
    %v1808 = vmul.f32 %v1743, %v1807
    %v1809 = vsub.f32 1.0, %v1808
    %v1810 = vmul.f32 %v1807, %v1809
    %v1811 = vadd.f32 %v1807, %v1810
    %vm1812 = vweird.f32 %v1743
    %vm1813 = vweird.f32 %v1807
    %vm1814 = vmor %vm1812, %vm1813
    %v1815 = vsel %vm1814, %v1807, %v1811
    %v1816 = vand.u32 2147483647, %v1743
    %vm1817 = vcmp.eq.f32.partialorder %v1816, 8.507059e+37
    %v1818 = vand.u32 %v1743, 2147483648
    %v1819 = vor.u32 1.1754944e-38, %v1818
    %v1820 = vsel %vm1817, %v1819, %v1815
    %v1821 = vmul.f32 1.0, %v1820
    %v1822 = vrcp.pop %v1744
    %v1823 = vmul.f32 %v1744, %v1822
    %v1824 = vsub.f32 1.0, %v1823
    %v1825 = vmul.f32 %v1822, %v1824
    %v1826 = vadd.f32 %v1822, %v1825
    %vm1827 = vweird.f32 %v1744
    %vm1828 = vweird.f32 %v1822
    %vm1829 = vmor %vm1827, %vm1828
    %v1830 = vsel %vm1829, %v1822, %v1826
    %v1831 = vand.u32 2147483647, %v1744
    %vm1832 = vcmp.eq.f32.partialorder %v1831, 8.507059e+37
    %v1833 = vand.u32 %v1744, 2147483648
    %v1834 = vor.u32 1.1754944e-38, %v1833
    %v1835 = vsel %vm1832, %v1834, %v1830
    %v1836 = vmul.f32 1.0, %v1835
    %v1837 = vrcp.pop %v1745
    %v1838 = vmul.f32 %v1745, %v1837
    %v1839 = vsub.f32 1.0, %v1838
    %v1840 = vmul.f32 %v1837, %v1839
    %v1841 = vadd.f32 %v1837, %v1840
    %vm1842 = vweird.f32 %v1745
    %vm1843 = vweird.f32 %v1837
    %vm1844 = vmor %vm1842, %vm1843
    %v1845 = vsel %vm1844, %v1837, %v1841
    %v1846 = vand.u32 2147483647, %v1745
    %vm1847 = vcmp.eq.f32.partialorder %v1846, 8.507059e+37
    %v1848 = vand.u32 %v1745, 2147483648
    %v1849 = vor.u32 1.1754944e-38, %v1848
    %v1850 = vsel %vm1847, %v1849, %v1845
    %v1851 = vmul.f32 1.0, %v1850
    %v1852 = vrcp.pop %v1746
    %v1853 = vmul.f32 %v1746, %v1852
    %v1854 = vsub.f32 1.0, %v1853
    %v1855 = vmul.f32 %v1852, %v1854
    %v1856 = vadd.f32 %v1852, %v1855
    %vm1857 = vweird.f32 %v1746
    %vm1858 = vweird.f32 %v1852
    %vm1859 = vmor %vm1857, %vm1858
    %v1860 = vsel %vm1859, %v1852, %v1856
    %v1861 = vand.u32 2147483647, %v1746
    %vm1862 = vcmp.eq.f32.partialorder %v1861, 8.507059e+37
    %v1863 = vand.u32 %v1746, 2147483648
    %v1864 = vor.u32 1.1754944e-38, %v1863
    %v1865 = vsel %vm1862, %v1864, %v1860
    %v1866 = vmul.f32 1.0, %v1865
    %v1867 = vmul.f32 %v1707, %v1761
    %v1868 = vmul.f32 %v1708, %v1776
    %v1869 = vmul.f32 %v1709, %v1791
    %v1870 = vmul.f32 %v1710, %v1806
    %v1871 = vmul.f32 %v1711, %v1821
    %v1872 = vmul.f32 %v1712, %v1836
    %v1873 = vmul.f32 %v1713, %v1851
    %v1874 = vmul.f32 %v1714, %v1866
    %v1875 = vld [vmem:[#allocation10] sm:$0xff]
    %v1876 = vld [vmem:[#allocation10 + $0x8] sm:$0xff]
    %v1877 = vld [vmem:[#allocation10 + $0x10] sm:$0xff]
    %v1878 = vld [vmem:[#allocation10 + $0x18] sm:$0xff]
    %v1879 = vld [vmem:[#allocation10 + $0x20] sm:$0xff]
    %v1880 = vld [vmem:[#allocation10 + $0x28] sm:$0xff]
    %v1881 = vld [vmem:[#allocation10 + $0x30] sm:$0xff]
    %v1882 = vld [vmem:[#allocation10 + $0x38] sm:$0xff]
    %v1883 = vld [vmem:[#allocation10 + $0x40] sm:$0xff]
    %v1884 = vld [vmem:[#allocation10 + $0x48] sm:$0xff]
    %v1885 = vld [vmem:[#allocation10 + $0x50] sm:$0xff]
    %v1886 = vld [vmem:[#allocation10 + $0x58] sm:$0xff]
    %v1887 = vld [vmem:[#allocation10 + $0x60] sm:$0xff]
    %v1888 = vld [vmem:[#allocation10 + $0x68] sm:$0xff]
    %v1889 = vld [vmem:[#allocation10 + $0x70] sm:$0xff]
    %v1890 = vld [vmem:[#allocation10 + $0x78] sm:$0xff]
    %v1891 = vld [vmem:[#allocation10 + $0x80] sm:$0xff]
    %v1892 = vld [vmem:[#allocation10 + $0x88] sm:$0xff]
    %v1893 = vld [vmem:[#allocation10 + $0x90] sm:$0xff]
    %v1894 = vld [vmem:[#allocation10 + $0x98] sm:$0xff]
    %v1895 = vld [vmem:[#allocation10 + $0xa0] sm:$0xff]
    %v1896 = vld [vmem:[#allocation10 + $0xa8] sm:$0xff]
    %v1897 = vld [vmem:[#allocation10 + $0xb0] sm:$0xff]
    %v1898 = vld [vmem:[#allocation10 + $0xb8] sm:$0xff]
    %v1899 = vld [vmem:[#allocation10 + $0xc0] sm:$0xff]
    %v1900 = vld [vmem:[#allocation10 + $0xc8] sm:$0xff]
    %v1901 = vld [vmem:[#allocation10 + $0xd0] sm:$0xff]
    %v1902 = vld [vmem:[#allocation10 + $0xd8] sm:$0xff]
    %v1903 = vld [vmem:[#allocation10 + $0xe0] sm:$0xff]
    %v1904 = vld [vmem:[#allocation10 + $0xe8] sm:$0xff]
    %v1905 = vld [vmem:[#allocation10 + $0xf0] sm:$0xff]
    %v1906 = vld [vmem:[#allocation10 + $0xf8] sm:$0xff]
    %v1907 = vld [vmem:[#allocation10 + $0x100] sm:$0xff]
    %v1908 = vld [vmem:[#allocation10 + $0x108] sm:$0xff]
    %v1909 = vld [vmem:[#allocation10 + $0x110] sm:$0xff]
    %v1910 = vld [vmem:[#allocation10 + $0x118] sm:$0xff]
    %v1911 = vld [vmem:[#allocation10 + $0x120] sm:$0xff]
    %v1912 = vld [vmem:[#allocation10 + $0x128] sm:$0xff]
    %v1913 = vld [vmem:[#allocation10 + $0x130] sm:$0xff]
    %v1914 = vld [vmem:[#allocation10 + $0x138] sm:$0xff]
    %v1915 = vld [vmem:[#allocation10 + $0x140] sm:$0xff]
    %v1916 = vld [vmem:[#allocation10 + $0x148] sm:$0xff]
    %v1917 = vld [vmem:[#allocation10 + $0x150] sm:$0xff]
    %v1918 = vld [vmem:[#allocation10 + $0x158] sm:$0xff]
    %v1919 = vld [vmem:[#allocation10 + $0x160] sm:$0xff]
    %v1920 = vld [vmem:[#allocation10 + $0x168] sm:$0xff]
    %v1921 = vld [vmem:[#allocation10 + $0x170] sm:$0xff]
    %v1922 = vld [vmem:[#allocation10 + $0x178] sm:$0xff]
    %v1923 = vld [vmem:[#allocation10 + $0x180] sm:$0xff]
    %v1924 = vld [vmem:[#allocation10 + $0x188] sm:$0xff]
    %v1925 = vld [vmem:[#allocation10 + $0x190] sm:$0xff]
    %v1926 = vld [vmem:[#allocation10 + $0x198] sm:$0xff]
    %v1927 = vld [vmem:[#allocation10 + $0x1a0] sm:$0xff]
    %v1928 = vld [vmem:[#allocation10 + $0x1a8] sm:$0xff]
    %v1929 = vld [vmem:[#allocation10 + $0x1b0] sm:$0xff]
    %v1930 = vld [vmem:[#allocation10 + $0x1b8] sm:$0xff]
    %v1931 = vld [vmem:[#allocation10 + $0x1c0] sm:$0xff]
    %v1932 = vld [vmem:[#allocation10 + $0x1c8] sm:$0xff]
    %v1933 = vld [vmem:[#allocation10 + $0x1d0] sm:$0xff]
    %v1934 = vld [vmem:[#allocation10 + $0x1d8] sm:$0xff]
    %v1935 = vld [vmem:[#allocation10 + $0x1e0] sm:$0xff]
    %v1936 = vld [vmem:[#allocation10 + $0x1e8] sm:$0xff]
    %v1937 = vld [vmem:[#allocation10 + $0x1f0] sm:$0xff]
    %v1938 = vld [vmem:[#allocation10 + $0x1f8] sm:$0xff]
    %v1939 = vld [vmem:[#allocation10 + $0x200] sm:$0xff]
    %v1940 = vld [vmem:[#allocation10 + $0x208] sm:$0xff]
    %v1941 = vld [vmem:[#allocation10 + $0x210] sm:$0xff]
    %v1942 = vld [vmem:[#allocation10 + $0x218] sm:$0xff]
    %v1943 = vld [vmem:[#allocation10 + $0x220] sm:$0xff]
    %v1944 = vld [vmem:[#allocation10 + $0x228] sm:$0xff]
    %v1945 = vld [vmem:[#allocation10 + $0x230] sm:$0xff]
    %v1946 = vld [vmem:[#allocation10 + $0x238] sm:$0xff]
    %v1947 = vld [vmem:[#allocation10 + $0x240] sm:$0xff]
    %v1948 = vld [vmem:[#allocation10 + $0x248] sm:$0xff]
    %v1949 = vld [vmem:[#allocation10 + $0x250] sm:$0xff]
    %v1950 = vld [vmem:[#allocation10 + $0x258] sm:$0xff]
    %v1951 = vld [vmem:[#allocation10 + $0x260] sm:$0xff]
    %v1952 = vld [vmem:[#allocation10 + $0x268] sm:$0xff]
    %v1953 = vld [vmem:[#allocation10 + $0x270] sm:$0xff]
    %v1954 = vld [vmem:[#allocation10 + $0x278] sm:$0xff]
    %v1955 = vld [vmem:[#allocation10 + $0x280] sm:$0xff]
    %v1956 = vld [vmem:[#allocation10 + $0x288] sm:$0xff]
    %v1957 = vld [vmem:[#allocation10 + $0x290] sm:$0xff]
    %v1958 = vld [vmem:[#allocation10 + $0x298] sm:$0xff]
    %v1959 = vld [vmem:[#allocation10 + $0x2a0] sm:$0xff]
    %v1960 = vld [vmem:[#allocation10 + $0x2a8] sm:$0xff]
    %v1961 = vld [vmem:[#allocation10 + $0x2b0] sm:$0xff]
    %v1962 = vld [vmem:[#allocation10 + $0x2b8] sm:$0xff]
    %v1963 = vld [vmem:[#allocation10 + $0x2c0] sm:$0xff]
    %v1964 = vld [vmem:[#allocation10 + $0x2c8] sm:$0xff]
    %v1965 = vld [vmem:[#allocation10 + $0x2d0] sm:$0xff]
    %v1966 = vld [vmem:[#allocation10 + $0x2d8] sm:$0xff]
    %v1967 = vld [vmem:[#allocation10 + $0x2e0] sm:$0xff]
    %v1968 = vld [vmem:[#allocation10 + $0x2e8] sm:$0xff]
    %v1969 = vld [vmem:[#allocation10 + $0x2f0] sm:$0xff]
    %v1970 = vld [vmem:[#allocation10 + $0x2f8] sm:$0xff]
    %v1971 = vld [vmem:[#allocation10 + $0x300] sm:$0xff]
    %v1972 = vld [vmem:[#allocation10 + $0x308] sm:$0xff]
    %v1973 = vld [vmem:[#allocation10 + $0x310] sm:$0xff]
    %v1974 = vld [vmem:[#allocation10 + $0x318] sm:$0xff]
    %v1975 = vld [vmem:[#allocation10 + $0x320] sm:$0xff]
    %v1976 = vld [vmem:[#allocation10 + $0x328] sm:$0xff]
    %v1977 = vld [vmem:[#allocation10 + $0x330] sm:$0xff]
    %v1978 = vld [vmem:[#allocation10 + $0x338] sm:$0xff]
    %v1979 = vld [vmem:[#allocation10 + $0x340] sm:$0xff]
    %v1980 = vld [vmem:[#allocation10 + $0x348] sm:$0xff]
    %v1981 = vld [vmem:[#allocation10 + $0x350] sm:$0xff]
    %v1982 = vld [vmem:[#allocation10 + $0x358] sm:$0xff]
    %v1983 = vld [vmem:[#allocation10 + $0x360] sm:$0xff]
    %v1984 = vld [vmem:[#allocation10 + $0x368] sm:$0xff]
    %v1985 = vld [vmem:[#allocation10 + $0x370] sm:$0xff]
    %v1986 = vld [vmem:[#allocation10 + $0x378] sm:$0xff]
    %v1987 = vld [vmem:[#allocation10 + $0x380] sm:$0xff]
    %v1988 = vld [vmem:[#allocation10 + $0x388] sm:$0xff]
    %v1989 = vld [vmem:[#allocation10 + $0x390] sm:$0xff]
    %v1990 = vld [vmem:[#allocation10 + $0x398] sm:$0xff]
    %v1991 = vld [vmem:[#allocation10 + $0x3a0] sm:$0xff]
    %v1992 = vld [vmem:[#allocation10 + $0x3a8] sm:$0xff]
    %v1993 = vld [vmem:[#allocation10 + $0x3b0] sm:$0xff]
    %v1994 = vld [vmem:[#allocation10 + $0x3b8] sm:$0xff]
    %v1995 = vld [vmem:[#allocation10 + $0x3c0] sm:$0xff]
    %v1996 = vld [vmem:[#allocation10 + $0x3c8] sm:$0xff]
    %v1997 = vld [vmem:[#allocation10 + $0x3d0] sm:$0xff]
    %v1998 = vld [vmem:[#allocation10 + $0x3d8] sm:$0xff]
    %v1999 = vld [vmem:[#allocation10 + $0x3e0] sm:$0xff]
    %v2000 = vld [vmem:[#allocation10 + $0x3e8] sm:$0xff]
    %v2001 = vld [vmem:[#allocation10 + $0x3f0] sm:$0xff]
    %v2002 = vld [vmem:[#allocation10 + $0x3f8] sm:$0xff]
    %2003 = vmatpush.msra.mxu0 %v1890
    %2004 = vmatpush.msra.mxu0 %v1889
    %2005 = vmatpush.msra.mxu0 %v1888
    %2006 = vmatpush.msra.mxu0 %v1887
    %2007 = vmatpush.msra.mxu0 %v1886
    %2008 = vmatpush.msra.mxu0 %v1885
    %2009 = vmatpush.msra.mxu0 %v1884
    %2010 = vmatpush.msra.mxu0 %v1883
    %2011 = vmatpush.msra.mxu0 %v1882
    %2012 = vmatpush.msra.mxu0 %v1881
    %2013 = vmatpush.msra.mxu0 %v1880
    %2014 = vmatpush.msra.mxu0 %v1879
    %2015 = vmatpush.msra.mxu0 %v1878
    %2016 = vmatpush.msra.mxu0 %v1877
    %2017 = vmatpush.msra.mxu0 %v1876
    %2018 = vmatpush.msra.mxu0 %v1875
    %2019 = vmatmul.f32.gmra.mxu0 %v1867
    %v2020 = vpop.f32.mrf.mxu0
    %v2021 = vadd.f32 0.0, %v2020
    %2022 = vdwg.mxu0
    %2023 = vmatpush.msra.mxu0 %v1906
    %2024 = vmatpush.msra.mxu0 %v1905
    %2025 = vmatpush.msra.mxu0 %v1904
    %2026 = vmatpush.msra.mxu0 %v1903
    %2027 = vmatpush.msra.mxu0 %v1902
    %2028 = vmatpush.msra.mxu0 %v1901
    %2029 = vmatpush.msra.mxu0 %v1900
    %2030 = vmatpush.msra.mxu0 %v1899
    %2031 = vmatpush.msra.mxu0 %v1898
    %2032 = vmatpush.msra.mxu0 %v1897
    %2033 = vmatpush.msra.mxu0 %v1896
    %2034 = vmatpush.msra.mxu0 %v1895
    %2035 = vmatpush.msra.mxu0 %v1894
    %2036 = vmatpush.msra.mxu0 %v1893
    %2037 = vmatpush.msra.mxu0 %v1892
    %2038 = vmatpush.msra.mxu0 %v1891
    %2039 = vmatmul.f32.gmra.mxu0 %v1868
    %v2040 = vpop.f32.mrf.mxu0
    %v2041 = vadd.f32 %v2021, %v2040
    %2042 = vdwg.mxu0
    %2043 = vmatpush.msra.mxu0 %v1922
    %2044 = vmatpush.msra.mxu0 %v1921
    %2045 = vmatpush.msra.mxu0 %v1920
    %2046 = vmatpush.msra.mxu0 %v1919
    %2047 = vmatpush.msra.mxu0 %v1918
    %2048 = vmatpush.msra.mxu0 %v1917
    %2049 = vmatpush.msra.mxu0 %v1916
    %2050 = vmatpush.msra.mxu0 %v1915
    %2051 = vmatpush.msra.mxu0 %v1914
    %2052 = vmatpush.msra.mxu0 %v1913
    %2053 = vmatpush.msra.mxu0 %v1912
    %2054 = vmatpush.msra.mxu0 %v1911
    %2055 = vmatpush.msra.mxu0 %v1910
    %2056 = vmatpush.msra.mxu0 %v1909
    %2057 = vmatpush.msra.mxu0 %v1908
    %2058 = vmatpush.msra.mxu0 %v1907
    %2059 = vmatmul.f32.gmra.mxu0 %v1869
    %v2060 = vpop.f32.mrf.mxu0
    %v2061 = vadd.f32 %v2041, %v2060
    %2062 = vdwg.mxu0
    %2063 = vmatpush.msra.mxu0 %v1938
    %2064 = vmatpush.msra.mxu0 %v1937
    %2065 = vmatpush.msra.mxu0 %v1936
    %2066 = vmatpush.msra.mxu0 %v1935
    %2067 = vmatpush.msra.mxu0 %v1934
    %2068 = vmatpush.msra.mxu0 %v1933
    %2069 = vmatpush.msra.mxu0 %v1932
    %2070 = vmatpush.msra.mxu0 %v1931
    %2071 = vmatpush.msra.mxu0 %v1930
    %2072 = vmatpush.msra.mxu0 %v1929
    %2073 = vmatpush.msra.mxu0 %v1928
    %2074 = vmatpush.msra.mxu0 %v1927
    %2075 = vmatpush.msra.mxu0 %v1926
    %2076 = vmatpush.msra.mxu0 %v1925
    %2077 = vmatpush.msra.mxu0 %v1924
    %2078 = vmatpush.msra.mxu0 %v1923
    %2079 = vmatmul.f32.gmra.mxu0 %v1870
    %v2080 = vpop.f32.mrf.mxu0
    %v2081 = vadd.f32 %v2061, %v2080
    %2082 = vdwg.mxu0
    %2083 = vmatpush.msra.mxu0 %v1954
    %2084 = vmatpush.msra.mxu0 %v1953
    %2085 = vmatpush.msra.mxu0 %v1952
    %2086 = vmatpush.msra.mxu0 %v1951
    %2087 = vmatpush.msra.mxu0 %v1950
    %2088 = vmatpush.msra.mxu0 %v1949
    %2089 = vmatpush.msra.mxu0 %v1948
    %2090 = vmatpush.msra.mxu0 %v1947
    %2091 = vmatpush.msra.mxu0 %v1946
    %2092 = vmatpush.msra.mxu0 %v1945
    %2093 = vmatpush.msra.mxu0 %v1944
    %2094 = vmatpush.msra.mxu0 %v1943
    %2095 = vmatpush.msra.mxu0 %v1942
    %2096 = vmatpush.msra.mxu0 %v1941
    %2097 = vmatpush.msra.mxu0 %v1940
    %2098 = vmatpush.msra.mxu0 %v1939
    %2099 = vmatmul.f32.gmra.mxu0 %v1871
    %v2100 = vpop.f32.mrf.mxu0
    %v2101 = vadd.f32 %v2081, %v2100
    %2102 = vdwg.mxu0
    %2103 = vmatpush.msra.mxu0 %v1970
    %2104 = vmatpush.msra.mxu0 %v1969
    %2105 = vmatpush.msra.mxu0 %v1968
    %2106 = vmatpush.msra.mxu0 %v1967
    %2107 = vmatpush.msra.mxu0 %v1966
    %2108 = vmatpush.msra.mxu0 %v1965
    %2109 = vmatpush.msra.mxu0 %v1964
    %2110 = vmatpush.msra.mxu0 %v1963
    %2111 = vmatpush.msra.mxu0 %v1962
    %2112 = vmatpush.msra.mxu0 %v1961
    %2113 = vmatpush.msra.mxu0 %v1960
    %2114 = vmatpush.msra.mxu0 %v1959
    %2115 = vmatpush.msra.mxu0 %v1958
    %2116 = vmatpush.msra.mxu0 %v1957
    %2117 = vmatpush.msra.mxu0 %v1956
    %2118 = vmatpush.msra.mxu0 %v1955
    %2119 = vmatmul.f32.gmra.mxu0 %v1872
    %v2120 = vpop.f32.mrf.mxu0
    %v2121 = vadd.f32 %v2101, %v2120
    %2122 = vdwg.mxu0
    %2123 = vmatpush.msra.mxu0 %v1986
    %2124 = vmatpush.msra.mxu0 %v1985
    %2125 = vmatpush.msra.mxu0 %v1984
    %2126 = vmatpush.msra.mxu0 %v1983
    %2127 = vmatpush.msra.mxu0 %v1982
    %2128 = vmatpush.msra.mxu0 %v1981
    %2129 = vmatpush.msra.mxu0 %v1980
    %2130 = vmatpush.msra.mxu0 %v1979
    %2131 = vmatpush.msra.mxu0 %v1978
    %2132 = vmatpush.msra.mxu0 %v1977
    %2133 = vmatpush.msra.mxu0 %v1976
    %2134 = vmatpush.msra.mxu0 %v1975
    %2135 = vmatpush.msra.mxu0 %v1974
    %2136 = vmatpush.msra.mxu0 %v1973
    %2137 = vmatpush.msra.mxu0 %v1972
    %2138 = vmatpush.msra.mxu0 %v1971
    %2139 = vmatmul.f32.gmra.mxu0 %v1873
    %v2140 = vpop.f32.mrf.mxu0
    %v2141 = vadd.f32 %v2121, %v2140
    %2142 = vdwg.mxu0
    %2143 = vmatpush.msra.mxu0 %v2002
    %2144 = vmatpush.msra.mxu0 %v2001
    %2145 = vmatpush.msra.mxu0 %v2000
    %2146 = vmatpush.msra.mxu0 %v1999
    %2147 = vmatpush.msra.mxu0 %v1998
    %2148 = vmatpush.msra.mxu0 %v1997
    %2149 = vmatpush.msra.mxu0 %v1996
    %2150 = vmatpush.msra.mxu0 %v1995
    %2151 = vmatpush.msra.mxu0 %v1994
    %2152 = vmatpush.msra.mxu0 %v1993
    %2153 = vmatpush.msra.mxu0 %v1992
    %2154 = vmatpush.msra.mxu0 %v1991
    %2155 = vmatpush.msra.mxu0 %v1990
    %2156 = vmatpush.msra.mxu0 %v1989
    %2157 = vmatpush.msra.mxu0 %v1988
    %2158 = vmatpush.msra.mxu0 %v1987
    %2159 = vmatmul.f32.gmra.mxu0 %v1874
    %v2160 = vpop.f32.mrf.mxu0
    %v2161 = vadd.f32 %v2141, %v2160
    %2162 = vdwg.mxu0
    %v2163 = vadd.f32 %v102, %v2161
    %v2164 = vld [vmem:[%s7] sm:$0x1]
    %v2166 = vperm.slane %v2164, 0
    %v2168 = vadd.f32 %v2163, %v2166
    %2169 = vst [vmem:[#allocation11] sm:$0x3] %v2168
    // Predicated region
    $region54: #{model_wrapper_forward.1} parent=1 // pred_check
      _
    $region55: #{model_wrapper_forward.1} parent=1 // pred_check_branch
      %2171 = sbr.rel (0) target = $region57
    $region56: #{model_wrapper_forward.1} parent=1 // pred_region
      %2173 = vsyncadd [#allocation4], 0
      %s2175 = sshll.u32 [#allocation11], 4
      %s2176 = int_to_ptr.vmem [resolvable:$true] %s2175
      %s2177 = sshll.u32 %s8, 4
      %s2178 = int_to_ptr.hbm [resolvable:$true] %s2177
      %2180 = dma.vmem_to_hbm [thread:$0]  %s2176, 32, %s2178, [#allocation4]
    $region57: #{model_wrapper_forward.1} parent=1 // pred_fallthru
      _
    // Predicated region
    $region58: #{model_wrapper_forward.1} parent=1 // pred_check
      _
    $region59: #{model_wrapper_forward.1} parent=1 // pred_check_branch
      %2182 = sbr.rel (0) target = $region61
    $region60: #{model_wrapper_forward.1} parent=1 // pred_region
      %2184 = dma.done [#allocation4], 32
    $region61: #{model_wrapper_forward.1} parent=1 // pred_fallthru
      _
    %2185 = vsyncpa [#allocation3], 1
    %2186 = vsyncpa [#allocation6], 1
    %2187 = vsyncpa [#allocation9], 1
    %2188 = vsyncpa [#allocation4], 1

</llo_original>
